<compile_context>
chip_gen: v5e
topology: v5e:2x2
jax: 0.10.0
libtpu: 0.0.40
codegen_flags: <defaults>
</compile_context>

<pallas_src>
import functools

import jax
import jax.numpy as jnp
from jax.experimental import pallas as pl
from jax.experimental.pallas import tpu as pltpu

EPS = 1e-5  # torch.nn.BatchNorm1d default


def _bn_train(h, gamma, beta):
    """BatchNorm1d forward, training mode (batch stats, biased variance).

    gamma is folded into the rsqrt scale and beta into the shift so the whole
    affine normalization is one rsqrt (EUP) + one fused multiply-add (VPU).
    All elementwise math is f32 (v5e VPU/EUP have no bf16 path).
    """
    mean = jnp.mean(h, axis=0, keepdims=True)
    var = jnp.mean((h - mean) ** 2, axis=0, keepdims=True)
    scale = gamma * jax.lax.rsqrt(var + EPS)
    return h * scale + (beta - mean * scale)


def _dot_bf16(h, w_ref):
    """MXU matmul: bf16 operands, f32 accumulation."""
    return jnp.dot(h.astype(jnp.bfloat16), w_ref[...],
                   preferred_element_type=jnp.float32)


def _consistency_kernel(with_head, x_ref, bn_ref, w1_ref, w2_ref, w3_ref, *rest):
    """Fused projection (+ optional projection_head).

    bn_ref packs the small per-column vectors as rows of a (9, 256) f32 array:
      row 0: g1   row 1: be1   row 2: g2   row 3: be2
      row 4: g3   row 5: be3   row 6: g4 (cols 0:64)   row 7: be4 (cols 0:64)
      row 8: b5
    Bias terms b1..b4 are intentionally absent: a constant added per column
    before BatchNorm is exactly cancelled by the batch-mean subtraction.
    """
    out_ref = rest[-1]

    g1, be1 = bn_ref[0:1, :], bn_ref[1:2, :]
    g2, be2 = bn_ref[2:3, :], bn_ref[3:4, :]
    g3, be3 = bn_ref[4:5, :], bn_ref[5:6, :]

    # projection: Linear -> BN -> ReLU -> Linear -> BN -> ReLU -> Linear -> BN
    h = jnp.maximum(_bn_train(_dot_bf16(x_ref[...], w1_ref), g1, be1), 0.0)
    h = jnp.maximum(_bn_train(_dot_bf16(h, w2_ref), g2, be2), 0.0)
    h = _bn_train(_dot_bf16(h, w3_ref), g3, be3)

    if with_head:
        # projection_head: Linear(256,64) -> BN -> ReLU -> Linear(64,256)
        w4_ref, w5_ref = rest[0], rest[1]
        g4, be4 = bn_ref[6:7, 0:64], bn_ref[7:8, 0:64]
        b5 = bn_ref[8:9, :]
        h = jnp.maximum(_bn_train(_dot_bf16(h, w4_ref), g4, be4), 0.0)
        h = _dot_bf16(h, w5_ref) + b5

    out_ref[...] = h


def muzero_consistency_forward(hidden_state, params, with_grad):
    """Mirrors MuZeroConsistencyNetwork.forward(hidden_state, with_grad)."""
    B = hidden_state.shape[0]
    x = hidden_state.reshape(B, -1)  # .view(-1, in_dim); cast to bf16 happens once in-kernel
    in_dim = x.shape[1]

    args = [x, params["bn_pack"], params["w1"], params["w2"], params["w3"]]
    flops = 2 * B * (in_dim * 256 + 256 * 256 + 256 * 256)
    weight_bytes = (in_dim * 256 + 256 * 256 + 256 * 256) * 2  # bf16
    if with_grad:
        args += [params["w4"], params["w5"]]
        flops += 2 * B * (256 * 64 + 64 * 256)
        weight_bytes += (256 * 64 + 64 * 256) * 2

    bytes_accessed = (x.size * x.dtype.itemsize
                      + params["bn_pack"].size * 4
                      + weight_bytes
                      + B * 256 * 4)

    kernel = functools.partial(_consistency_kernel, with_grad)
    out = pl.pallas_call(
        kernel,
        out_shape=jax.ShapeDtypeStruct((B, 256), jnp.float32),
        in_specs=[pl.BlockSpec(memory_space=pltpu.MemorySpace.VMEM)] * len(args),
        out_specs=pl.BlockSpec(memory_space=pltpu.MemorySpace.VMEM),
        cost_estimate=pl.CostEstimate(flops=flops,
                                      transcendentals=4 * 256,  # 4 BN rsqrts
                                      bytes_accessed=bytes_accessed),
    )(*args)

    if with_grad:
        return {"proj": out}
    # torch .detach() -> stop_gradient (numerically identical)
    return {"proj": jax.lax.stop_gradient(out)}


def init_params(key, in_dim):
    """Init matching PyTorch defaults in shape/scale.

    Linear weights are cached as bf16 ONCE here (not per call).  The small
    BN/bias vectors are packed into a single (9, 256) f32 array so the kernel
    gets one lane-dense prologue DMA instead of nine tiny padded ones.
    b1..b4 are created to mirror the PyTorch module but are not used: each is
    followed by BatchNorm, which cancels them exactly.
    """
    def linear(key, fan_in, fan_out):
        kw, kb = jax.random.split(key)
        bound = 1.0 / jnp.sqrt(jnp.float32(fan_in))
        w = jax.random.uniform(kw, (fan_in, fan_out), jnp.float32, -bound, bound)
        b = jax.random.uniform(kb, (1, fan_out), jnp.float32, -bound, bound)
        return w, b

    keys = jax.random.split(key, 5)
    params = {}
    f32w = {}
    dims = [(in_dim, 256), (256, 256), (256, 256), (256, 64), (64, 256)]
    for i, (fi, fo) in enumerate(dims, start=1):
        w, b = linear(keys[i - 1], fi, fo)
        f32w["w%d" % i] = w
        params["w%d" % i] = w.astype(jnp.bfloat16)   # cached bf16, cast once
        params["b%d" % i] = b

    # BatchNorm1d defaults: gamma = 1, beta = 0
    bn_pack = jnp.zeros((9, 256), jnp.float32)
    bn_pack = bn_pack.at[0, :].set(1.0)              # g1
    bn_pack = bn_pack.at[2, :].set(1.0)              # g2
    bn_pack = bn_pack.at[4, :].set(1.0)              # g3
    bn_pack = bn_pack.at[6, 0:64].set(1.0)           # g4 (padded to 256 lanes)
    bn_pack = bn_pack.at[8, :].set(params["b5"][0])  # b5
    params["bn_pack"] = bn_pack
    params["_f32_weights"] = f32w  # only used by the pure-JAX reference below
    return params


def _reference_forward(hidden_state, params, with_grad):
    """Pure-JAX f32 reference with full PyTorch semantics (biases included)."""
    w = params["_f32_weights"]
    b = {i: params["b%d" % i] for i in range(1, 6)}

    def bn(h, gamma, beta):
        m = jnp.mean(h, axis=0, keepdims=True)
        v = jnp.mean((h - m) ** 2, axis=0, keepdims=True)
        return (h - m) * jax.lax.rsqrt(v + EPS) * gamma + beta

    ones = lambda n: jnp.ones((1, n), jnp.float32)
    zeros = lambda n: jnp.zeros((1, n), jnp.float32)

    h = hidden_state.reshape(hidden_state.shape[0], -1).astype(jnp.float32)
    h = jnp.maximum(bn(h @ w["w1"] + b[1], ones(256), zeros(256)), 0.0)
    h = jnp.maximum(bn(h @ w["w2"] + b[2], ones(256), zeros(256)), 0.0)
    h = bn(h @ w["w3"] + b[3], ones(256), zeros(256))
    if with_grad:
        h = jnp.maximum(bn(h @ w["w4"] + b[4], ones(64), zeros(64)), 0.0)
        h = h @ w["w5"] + b[5]
    return h


if __name__ == "__main__":
    # num_hidden_channels=4, hidden_channel_height=16, hidden_channel_width=16
    B, C, H, W = 8, 4, 16, 16
    in_dim = C * H * W  # projection_in_dim

    key = jax.random.PRNGKey(0)
    k_x, k_p = jax.random.split(key)
    hidden_state = jax.random.normal(k_x, (B, C, H, W), jnp.float32)
    params = init_params(k_p, in_dim)

    out_grad = muzero_consistency_forward(hidden_state, params, with_grad=True)
    out_nograd = muzero_consistency_forward(hidden_state, params, with_grad=False)

    jax.block_until_ready(out_grad["proj"])
    jax.block_until_ready(out_nograd["proj"])

    assert out_grad["proj"].shape == (B, 256)
    assert out_nograd["proj"].shape == (B, 256)

    # Loose tolerance: bf16 matmul operands compound ~1e-2 relative deviation
    # across 5 layers vs. the f32 reference (see kernel header).
    ref_g = _reference_forward(hidden_state, params, True)
    ref_n = _reference_forward(hidden_state, params, False)
    err_g = float(jnp.max(jnp.abs(out_grad["proj"] - ref_g)))
    err_n = float(jnp.max(jnp.abs(out_nograd["proj"] - ref_n)))
    assert err_g < 0.2 and err_n < 0.2, (err_g, err_n)

    print("KERNEL_OK")
</pallas_src>

<mosaic_0001>
module attributes {stable_mosaic.version = 11 : i64} {
  func.func @_consistency_kernel(%arg0: memref<8x1024xf32, #tpu.memory_space<vmem>>, %arg1: memref<9x256xf32, #tpu.memory_space<vmem>>, %arg2: memref<1024x256xbf16, #tpu.memory_space<vmem>>, %arg3: memref<256x256xbf16, #tpu.memory_space<vmem>>, %arg4: memref<256x256xbf16, #tpu.memory_space<vmem>>, %arg5: memref<256x64xbf16, #tpu.memory_space<vmem>>, %arg6: memref<64x256xbf16, #tpu.memory_space<vmem>>, %arg7: memref<8x256xf32, #tpu.memory_space<vmem>>) attributes {dimension_semantics = [], scalar_prefetch = 0 : i64, scratch_operands = 0 : i64, tpu.core_type = #tpu.core_type<tc>} {
    %c0 = arith.constant 0 : index
    %c0_0 = arith.constant 0 : index
    %0 = vector.load %arg1[%c0, %c0_0] : memref<9x256xf32, #tpu.memory_space<vmem>>, vector<1x256xf32>
    %c1 = arith.constant 1 : index
    %c0_1 = arith.constant 0 : index
    %1 = vector.load %arg1[%c1, %c0_1] : memref<9x256xf32, #tpu.memory_space<vmem>>, vector<1x256xf32>
    %c2 = arith.constant 2 : index
    %c0_2 = arith.constant 0 : index
    %2 = vector.load %arg1[%c2, %c0_2] : memref<9x256xf32, #tpu.memory_space<vmem>>, vector<1x256xf32>
    %c3 = arith.constant 3 : index
    %c0_3 = arith.constant 0 : index
    %3 = vector.load %arg1[%c3, %c0_3] : memref<9x256xf32, #tpu.memory_space<vmem>>, vector<1x256xf32>
    %c4 = arith.constant 4 : index
    %c0_4 = arith.constant 0 : index
    %4 = vector.load %arg1[%c4, %c0_4] : memref<9x256xf32, #tpu.memory_space<vmem>>, vector<1x256xf32>
    %c5 = arith.constant 5 : index
    %c0_5 = arith.constant 0 : index
    %5 = vector.load %arg1[%c5, %c0_5] : memref<9x256xf32, #tpu.memory_space<vmem>>, vector<1x256xf32>
    %c0_6 = arith.constant 0 : index
    %c0_7 = arith.constant 0 : index
    %6 = vector.load %arg0[%c0_6, %c0_7] : memref<8x1024xf32, #tpu.memory_space<vmem>>, vector<8x1024xf32>
    %7 = arith.truncf %6 : vector<8x1024xf32> to vector<8x1024xbf16>
    %c0_8 = arith.constant 0 : index
    %c0_9 = arith.constant 0 : index
    %8 = vector.load %arg2[%c0_8, %c0_9] : memref<1024x256xbf16, #tpu.memory_space<vmem>>, vector<1024x256xbf16>
    %cst = arith.constant dense<0.000000e+00> : vector<8x256xf32>
    %9 = tpu.matmul %7, %8, %cst {dimension_numbers = #tpu.dot_dimension_numbers<[1], [0], [0], [1], [0, 0, 1, 1], [], []>} : vector<8x1024xbf16>, vector<1024x256xbf16>, vector<8x256xf32> -> vector<8x256xf32>
    %cst_10 = arith.constant dense<0.000000e+00> : vector<256xf32>
    %10 = vector.multi_reduction <add>, %9, %cst_10 [0] : vector<8x256xf32> to vector<256xf32>
    %11 = vector.shape_cast %10 : vector<256xf32> to vector<1x256xf32>
    %cst_11 = arith.constant 8.000000e+00 : f32
    %12 = vector.broadcast %cst_11 : f32 to vector<1x256xf32>
    %13 = arith.divf %11, %12 : vector<1x256xf32>
    %14 = vector.broadcast %13 : vector<1x256xf32> to vector<8x256xf32>
    %15 = arith.subf %9, %14 : vector<8x256xf32>
    %16 = arith.mulf %15, %15 : vector<8x256xf32>
    %cst_12 = arith.constant dense<0.000000e+00> : vector<256xf32>
    %17 = vector.multi_reduction <add>, %16, %cst_12 [0] : vector<8x256xf32> to vector<256xf32>
    %18 = vector.shape_cast %17 : vector<256xf32> to vector<1x256xf32>
    %cst_13 = arith.constant 8.000000e+00 : f32
    %19 = vector.broadcast %cst_13 : f32 to vector<1x256xf32>
    %20 = arith.divf %18, %19 : vector<1x256xf32>
    %cst_14 = arith.constant 9.99999974E-6 : f32
    %21 = vector.broadcast %cst_14 : f32 to vector<1x256xf32>
    %22 = arith.addf %20, %21 : vector<1x256xf32>
    %23 = math.rsqrt %22 : vector<1x256xf32>
    %24 = arith.mulf %0, %23 : vector<1x256xf32>
    %25 = vector.broadcast %24 : vector<1x256xf32> to vector<8x256xf32>
    %26 = arith.mulf %9, %25 : vector<8x256xf32>
    %27 = arith.mulf %13, %24 : vector<1x256xf32>
    %28 = arith.subf %1, %27 : vector<1x256xf32>
    %29 = vector.broadcast %28 : vector<1x256xf32> to vector<8x256xf32>
    %30 = arith.addf %26, %29 : vector<8x256xf32>
    %cst_15 = arith.constant 0.000000e+00 : f32
    %31 = vector.broadcast %cst_15 : f32 to vector<8x256xf32>
    %32 = arith.maximumf %30, %31 : vector<8x256xf32>
    %33 = arith.truncf %32 : vector<8x256xf32> to vector<8x256xbf16>
    %c0_16 = arith.constant 0 : index
    %c0_17 = arith.constant 0 : index
    %34 = vector.load %arg3[%c0_16, %c0_17] : memref<256x256xbf16, #tpu.memory_space<vmem>>, vector<256x256xbf16>
    %cst_18 = arith.constant dense<0.000000e+00> : vector<8x256xf32>
    %35 = tpu.matmul %33, %34, %cst_18 {dimension_numbers = #tpu.dot_dimension_numbers<[1], [0], [0], [1], [0, 0, 1, 1], [], []>} : vector<8x256xbf16>, vector<256x256xbf16>, vector<8x256xf32> -> vector<8x256xf32>
    %cst_19 = arith.constant dense<0.000000e+00> : vector<256xf32>
    %36 = vector.multi_reduction <add>, %35, %cst_19 [0] : vector<8x256xf32> to vector<256xf32>
    %37 = vector.shape_cast %36 : vector<256xf32> to vector<1x256xf32>
    %cst_20 = arith.constant 8.000000e+00 : f32
    %38 = vector.broadcast %cst_20 : f32 to vector<1x256xf32>
    %39 = arith.divf %37, %38 : vector<1x256xf32>
    %40 = vector.broadcast %39 : vector<1x256xf32> to vector<8x256xf32>
    %41 = arith.subf %35, %40 : vector<8x256xf32>
    %42 = arith.mulf %41, %41 : vector<8x256xf32>
    %cst_21 = arith.constant dense<0.000000e+00> : vector<256xf32>
    %43 = vector.multi_reduction <add>, %42, %cst_21 [0] : vector<8x256xf32> to vector<256xf32>
    %44 = vector.shape_cast %43 : vector<256xf32> to vector<1x256xf32>
    %cst_22 = arith.constant 8.000000e+00 : f32
    %45 = vector.broadcast %cst_22 : f32 to vector<1x256xf32>
    %46 = arith.divf %44, %45 : vector<1x256xf32>
    %cst_23 = arith.constant 9.99999974E-6 : f32
    %47 = vector.broadcast %cst_23 : f32 to vector<1x256xf32>
    %48 = arith.addf %46, %47 : vector<1x256xf32>
    %49 = math.rsqrt %48 : vector<1x256xf32>
    %50 = arith.mulf %2, %49 : vector<1x256xf32>
    %51 = vector.broadcast %50 : vector<1x256xf32> to vector<8x256xf32>
    %52 = arith.mulf %35, %51 : vector<8x256xf32>
    %53 = arith.mulf %39, %50 : vector<1x256xf32>
    %54 = arith.subf %3, %53 : vector<1x256xf32>
    %55 = vector.broadcast %54 : vector<1x256xf32> to vector<8x256xf32>
    %56 = arith.addf %52, %55 : vector<8x256xf32>
    %cst_24 = arith.constant 0.000000e+00 : f32
    %57 = vector.broadcast %cst_24 : f32 to vector<8x256xf32>
    %58 = arith.maximumf %56, %57 : vector<8x256xf32>
    %59 = arith.truncf %58 : vector<8x256xf32> to vector<8x256xbf16>
    %c0_25 = arith.constant 0 : index
    %c0_26 = arith.constant 0 : index
    %60 = vector.load %arg4[%c0_25, %c0_26] : memref<256x256xbf16, #tpu.memory_space<vmem>>, vector<256x256xbf16>
    %cst_27 = arith.constant dense<0.000000e+00> : vector<8x256xf32>
    %61 = tpu.matmul %59, %60, %cst_27 {dimension_numbers = #tpu.dot_dimension_numbers<[1], [0], [0], [1], [0, 0, 1, 1], [], []>} : vector<8x256xbf16>, vector<256x256xbf16>, vector<8x256xf32> -> vector<8x256xf32>
    %cst_28 = arith.constant dense<0.000000e+00> : vector<256xf32>
    %62 = vector.multi_reduction <add>, %61, %cst_28 [0] : vector<8x256xf32> to vector<256xf32>
    %63 = vector.shape_cast %62 : vector<256xf32> to vector<1x256xf32>
    %cst_29 = arith.constant 8.000000e+00 : f32
    %64 = vector.broadcast %cst_29 : f32 to vector<1x256xf32>
    %65 = arith.divf %63, %64 : vector<1x256xf32>
    %66 = vector.broadcast %65 : vector<1x256xf32> to vector<8x256xf32>
    %67 = arith.subf %61, %66 : vector<8x256xf32>
    %68 = arith.mulf %67, %67 : vector<8x256xf32>
    %cst_30 = arith.constant dense<0.000000e+00> : vector<256xf32>
    %69 = vector.multi_reduction <add>, %68, %cst_30 [0] : vector<8x256xf32> to vector<256xf32>
    %70 = vector.shape_cast %69 : vector<256xf32> to vector<1x256xf32>
    %cst_31 = arith.constant 8.000000e+00 : f32
    %71 = vector.broadcast %cst_31 : f32 to vector<1x256xf32>
    %72 = arith.divf %70, %71 : vector<1x256xf32>
    %cst_32 = arith.constant 9.99999974E-6 : f32
    %73 = vector.broadcast %cst_32 : f32 to vector<1x256xf32>
    %74 = arith.addf %72, %73 : vector<1x256xf32>
    %75 = math.rsqrt %74 : vector<1x256xf32>
    %76 = arith.mulf %4, %75 : vector<1x256xf32>
    %77 = vector.broadcast %76 : vector<1x256xf32> to vector<8x256xf32>
    %78 = arith.mulf %61, %77 : vector<8x256xf32>
    %79 = arith.mulf %65, %76 : vector<1x256xf32>
    %80 = arith.subf %5, %79 : vector<1x256xf32>
    %81 = vector.broadcast %80 : vector<1x256xf32> to vector<8x256xf32>
    %82 = arith.addf %78, %81 : vector<8x256xf32>
    %c6 = arith.constant 6 : index
    %c0_33 = arith.constant 0 : index
    %83 = vector.load %arg1[%c6, %c0_33] : memref<9x256xf32, #tpu.memory_space<vmem>>, vector<1x64xf32>
    %c7 = arith.constant 7 : index
    %c0_34 = arith.constant 0 : index
    %84 = vector.load %arg1[%c7, %c0_34] : memref<9x256xf32, #tpu.memory_space<vmem>>, vector<1x64xf32>
    %c8 = arith.constant 8 : index
    %c0_35 = arith.constant 0 : index
    %85 = vector.load %arg1[%c8, %c0_35] : memref<9x256xf32, #tpu.memory_space<vmem>>, vector<1x256xf32>
    %86 = arith.truncf %82 : vector<8x256xf32> to vector<8x256xbf16>
    %c0_36 = arith.constant 0 : index
    %c0_37 = arith.constant 0 : index
    %87 = vector.load %arg5[%c0_36, %c0_37] : memref<256x64xbf16, #tpu.memory_space<vmem>>, vector<256x64xbf16>
    %cst_38 = arith.constant dense<0.000000e+00> : vector<8x64xf32>
    %88 = tpu.matmul %86, %87, %cst_38 {dimension_numbers = #tpu.dot_dimension_numbers<[1], [0], [0], [1], [0, 0, 1, 1], [], []>} : vector<8x256xbf16>, vector<256x64xbf16>, vector<8x64xf32> -> vector<8x64xf32>
    %cst_39 = arith.constant dense<0.000000e+00> : vector<64xf32>
    %89 = vector.multi_reduction <add>, %88, %cst_39 [0] : vector<8x64xf32> to vector<64xf32>
    %90 = vector.shape_cast %89 : vector<64xf32> to vector<1x64xf32>
    %cst_40 = arith.constant 8.000000e+00 : f32
    %91 = vector.broadcast %cst_40 : f32 to vector<1x64xf32>
    %92 = arith.divf %90, %91 : vector<1x64xf32>
    %93 = vector.broadcast %92 : vector<1x64xf32> to vector<8x64xf32>
    %94 = arith.subf %88, %93 : vector<8x64xf32>
    %95 = arith.mulf %94, %94 : vector<8x64xf32>
    %cst_41 = arith.constant dense<0.000000e+00> : vector<64xf32>
    %96 = vector.multi_reduction <add>, %95, %cst_41 [0] : vector<8x64xf32> to vector<64xf32>
    %97 = vector.shape_cast %96 : vector<64xf32> to vector<1x64xf32>
    %cst_42 = arith.constant 8.000000e+00 : f32
    %98 = vector.broadcast %cst_42 : f32 to vector<1x64xf32>
    %99 = arith.divf %97, %98 : vector<1x64xf32>
    %cst_43 = arith.constant 9.99999974E-6 : f32
    %100 = vector.broadcast %cst_43 : f32 to vector<1x64xf32>
    %101 = arith.addf %99, %100 : vector<1x64xf32>
    %102 = math.rsqrt %101 : vector<1x64xf32>
    %103 = arith.mulf %83, %102 : vector<1x64xf32>
    %104 = vector.broadcast %103 : vector<1x64xf32> to vector<8x64xf32>
    %105 = arith.mulf %88, %104 : vector<8x64xf32>
    %106 = arith.mulf %92, %103 : vector<1x64xf32>
    %107 = arith.subf %84, %106 : vector<1x64xf32>
    %108 = vector.broadcast %107 : vector<1x64xf32> to vector<8x64xf32>
    %109 = arith.addf %105, %108 : vector<8x64xf32>
    %cst_44 = arith.constant 0.000000e+00 : f32
    %110 = vector.broadcast %cst_44 : f32 to vector<8x64xf32>
    %111 = arith.maximumf %109, %110 : vector<8x64xf32>
    %112 = arith.truncf %111 : vector<8x64xf32> to vector<8x64xbf16>
    %c0_45 = arith.constant 0 : index
    %c0_46 = arith.constant 0 : index
    %113 = vector.load %arg6[%c0_45, %c0_46] : memref<64x256xbf16, #tpu.memory_space<vmem>>, vector<64x256xbf16>
    %cst_47 = arith.constant dense<0.000000e+00> : vector<8x256xf32>
    %114 = tpu.matmul %112, %113, %cst_47 {dimension_numbers = #tpu.dot_dimension_numbers<[1], [0], [0], [1], [0, 0, 1, 1], [], []>} : vector<8x64xbf16>, vector<64x256xbf16>, vector<8x256xf32> -> vector<8x256xf32>
    %115 = vector.broadcast %85 : vector<1x256xf32> to vector<8x256xf32>
    %116 = arith.addf %114, %115 : vector<8x256xf32>
    %c0_48 = arith.constant 0 : index
    %c0_49 = arith.constant 0 : index
    %117 = vector.load %arg7[%c0_48, %c0_49] : memref<8x256xf32, #tpu.memory_space<vmem>>, vector<8x256xf32>
    tpu.vector_store %arg7[%c0_48, %c0_49], %116 {strides = array<i32>} : memref<8x256xf32, #tpu.memory_space<vmem>>, vector<8x256xf32>,
    return
  }
}

</mosaic_0001>

<llo_original>
// kernel: tpu_custom_call.1
$region0: #{tpu_custom_call.1}
  #allocation0 [shape = 'u32[]', space=smem, size = 0x4, offset = 0x4, fixed_abs, tag = 'smem constant byte address 0x4 - core index']
  #allocation1 [shape = 'u32[72,128]{1,0:T(1,128)}', space=vmem, size = 0x9000, scoped, tag = 'internal scratch']
  %s0 = inlined_call_operand.vmem [shape: f32[8,1024], index: 0, kind: input, shape index: {}]
  %s1 = inlined_call_operand.vmem [shape: f32[9,256], index: 1, kind: input, shape index: {}]
  %s2 = inlined_call_operand.hbm [shape: bf16[1024,256], index: 2, kind: input, shape index: {}]
  %s3 = inlined_call_operand.hbm [shape: bf16[256,256], index: 3, kind: input, shape index: {}]
  %s4 = inlined_call_operand.hbm [shape: bf16[256,256], index: 4, kind: input, shape index: {}]
  %s5 = inlined_call_operand.vmem [shape: bf16[256,64], index: 5, kind: input, shape index: {}]
  %s6 = inlined_call_operand.vmem [shape: bf16[64,256], index: 6, kind: input, shape index: {}]
  %s7 = inlined_call_operand.hbm [shape: f32[8,256], index: 7, kind: output, shape index: {}]
  %s8 = sld [smem:[#allocation0]]
  $region50: #{tpu_custom_call.1} parent=0
    _
  %s10 = ssub.s32 1, %s8
  %s11 = scalar_select 0, %s10, %s8
  $region1: #{tpu_custom_call.1} parent=0
    #allocation2 [shape = 'u8[524288]{0}', space=vmem, size = 0x80000, scoped, tag = 'input window, operand 2, single buffered']
    #allocation3 [shape = 's32[1]{0}', space=sflag, size = 0x4, scoped, tag = 'scoped memory for tpu_custom_call.1']
    #allocation4 [shape = 's32[1]{0}', space=sflag, size = 0x4, scoped, tag = 'scoped memory for tpu_custom_call.1']
    #allocation5 [shape = 'u8[131072]{0}', space=vmem, size = 0x20000, scoped, tag = 'input window, operand 3, single buffered']
    #allocation6 [shape = 's32[1]{0}', space=sflag, size = 0x4, scoped, tag = 'scoped memory for tpu_custom_call.1']
    #allocation7 [shape = 'u8[131072]{0}', space=vmem, size = 0x20000, scoped, tag = 'input window, operand 4, single buffered']
    #allocation8 [shape = 'u8[8192]{0}', space=vmem, size = 0x2000, scoped, tag = 'output window, operand 0, single buffered']
    %12 = vsyncpa [#allocation3], 0
    %13 = vsyncpa [#allocation6], 0
    %14 = vsyncpa [#allocation4], 0
    // Predicated region
    $region2: #{tpu_custom_call.1} parent=1 // pred_check
      _
    $region3: #{tpu_custom_call.1} parent=1 // pred_check_branch
      %16 = sbr.rel (0) target = $region5
    $region4: #{tpu_custom_call.1} parent=1 // pred_region
      _
    $region5: #{tpu_custom_call.1} parent=1 // pred_fallthru
      _
    // Predicated region
    $region6: #{tpu_custom_call.1} parent=1 // pred_check
      _
    $region7: #{tpu_custom_call.1} parent=1 // pred_check_branch
      %18 = sbr.rel (0) target = $region9
    $region8: #{tpu_custom_call.1} parent=1 // pred_region
      _
    $region9: #{tpu_custom_call.1} parent=1 // pred_fallthru
      _
    // Predicated region
    $region10: #{tpu_custom_call.1} parent=1 // pred_check
      _
    $region11: #{tpu_custom_call.1} parent=1 // pred_check_branch
      %20 = sbr.rel (0) target = $region13
    $region12: #{tpu_custom_call.1} parent=1 // pred_region
      %22 = vsyncadd [#allocation3], 0
      %s23 = sshll.u32 %s2, 4
      %s24 = int_to_ptr.hbm [resolvable:$true] %s23
      %s25 = sshll.u32 [#allocation2], 4
      %s26 = int_to_ptr.vmem [resolvable:$true] %s25
      %31 = dma.hbm_to_vmem [thread:$0]  %s24, 16384, %s26, [#allocation3], 128, 128, 8
    $region13: #{tpu_custom_call.1} parent=1 // pred_fallthru
      _
    // Predicated region
    $region14: #{tpu_custom_call.1} parent=1 // pred_check
      _
    $region15: #{tpu_custom_call.1} parent=1 // pred_check_branch
      %33 = sbr.rel (0) target = $region17
    $region16: #{tpu_custom_call.1} parent=1 // pred_region
      %35 = vsyncadd [#allocation6], 0
      %s36 = sshll.u32 %s3, 4
      %s37 = int_to_ptr.hbm [resolvable:$true] %s36
      %s38 = sshll.u32 [#allocation5], 4
      %s39 = int_to_ptr.vmem [resolvable:$true] %s38
      %44 = dma.hbm_to_vmem [thread:$0]  %s37, 4096, %s39, [#allocation6], 128, 128, 8
    $region17: #{tpu_custom_call.1} parent=1 // pred_fallthru
      _
    // Predicated region
    $region18: #{tpu_custom_call.1} parent=1 // pred_check
      _
    $region19: #{tpu_custom_call.1} parent=1 // pred_check_branch
      %46 = sbr.rel (0) target = $region21
    $region20: #{tpu_custom_call.1} parent=1 // pred_region
      %48 = vsyncadd [#allocation6], 0
      %s49 = sshll.u32 %s4, 4
      %s50 = int_to_ptr.hbm [resolvable:$true] %s49
      %s51 = sshll.u32 [#allocation7], 4
      %s52 = int_to_ptr.vmem [resolvable:$true] %s51
      %57 = dma.hbm_to_vmem [thread:$0]  %s50, 4096, %s52, [#allocation6], 128, 128, 8
    $region21: #{tpu_custom_call.1} parent=1 // pred_fallthru
      _
    // Predicated region
    $region22: #{tpu_custom_call.1} parent=1 // pred_check
      _
    $region23: #{tpu_custom_call.1} parent=1 // pred_check_branch
      %59 = sbr.rel (0) target = $region25
    $region24: #{tpu_custom_call.1} parent=1 // pred_region
      _
    $region25: #{tpu_custom_call.1} parent=1 // pred_fallthru
      _
    // Predicated region
    $region26: #{tpu_custom_call.1} parent=1 // pred_check
      _
    $region27: #{tpu_custom_call.1} parent=1 // pred_check_branch
      %61 = sbr.rel (0) target = $region29
    $region28: #{tpu_custom_call.1} parent=1 // pred_region
      _
    $region29: #{tpu_custom_call.1} parent=1 // pred_fallthru
      _
    // Predicated region
    $region30: #{tpu_custom_call.1} parent=1 // pred_check
      _
    $region31: #{tpu_custom_call.1} parent=1 // pred_check_branch
      %63 = sbr.rel (0) target = $region33
    $region32: #{tpu_custom_call.1} parent=1 // pred_region
      %65 = dma.done [#allocation3], 16384
    $region33: #{tpu_custom_call.1} parent=1 // pred_fallthru
      _
    // Predicated region
    $region34: #{tpu_custom_call.1} parent=1 // pred_check
      _
    $region35: #{tpu_custom_call.1} parent=1 // pred_check_branch
      %67 = sbr.rel (0) target = $region37
    $region36: #{tpu_custom_call.1} parent=1 // pred_region
      %69 = dma.done [#allocation6], 4096
    $region37: #{tpu_custom_call.1} parent=1 // pred_fallthru
      _
    // Predicated region
    $region38: #{tpu_custom_call.1} parent=1 // pred_check
      _
    $region39: #{tpu_custom_call.1} parent=1 // pred_check_branch
      %71 = sbr.rel (0) target = $region41
    $region40: #{tpu_custom_call.1} parent=1 // pred_region
      %73 = dma.done [#allocation6], 4096
    $region41: #{tpu_custom_call.1} parent=1 // pred_fallthru
      _
    %v75 = vld [vmem:[%s1] ss:$8 sm:$0x3]
    %s76 = scalar_lea.vmem %s1, 1
    %v77 = vld [vmem:[%s76] ss:$8 sm:$0x3]
    %s78 = scalar_lea.vmem %s1, 2
    %v79 = vld [vmem:[%s78] ss:$8 sm:$0x3]
    %s80 = scalar_lea.vmem %s1, 3
    %v81 = vld [vmem:[%s80] ss:$8 sm:$0x3]
    %s82 = scalar_lea.vmem %s1, 4
    %v83 = vld [vmem:[%s82] ss:$8 sm:$0x3]
    %s84 = scalar_lea.vmem %s1, 5
    %v85 = vld [vmem:[%s84] ss:$8 sm:$0x3]
    %v86 = vld [vmem:[%s0] sm:$0xff]
    %v87 = vld [vmem:[%s0 + $0x8] sm:$0xff]
    %v88 = vld [vmem:[%s0 + $0x10] sm:$0xff]
    %v89 = vld [vmem:[%s0 + $0x18] sm:$0xff]
    %v90 = vld [vmem:[%s0 + $0x20] sm:$0xff]
    %v91 = vld [vmem:[%s0 + $0x28] sm:$0xff]
    %v92 = vld [vmem:[%s0 + $0x30] sm:$0xff]
    %v93 = vld [vmem:[%s0 + $0x38] sm:$0xff]
    %v94 = vpack.c.bf16 %v86, %v86
    %v95 = vpack.c.bf16 %v87, %v87
    %v96 = vpack.c.bf16 %v88, %v88
    %v97 = vpack.c.bf16 %v89, %v89
    %v98 = vpack.c.bf16 %v90, %v90
    %v99 = vpack.c.bf16 %v91, %v91
    %v100 = vpack.c.bf16 %v92, %v92
    %v101 = vpack.c.bf16 %v93, %v93
    %v102 = vld [vmem:[#allocation2] sm:$0xff]
    %v103 = vld [vmem:[#allocation2 + $0x8] sm:$0xff]
    %v104 = vld [vmem:[#allocation2 + $0x10] sm:$0xff]
    %v105 = vld [vmem:[#allocation2 + $0x18] sm:$0xff]
    %v106 = vld [vmem:[#allocation2 + $0x20] sm:$0xff]
    %v107 = vld [vmem:[#allocation2 + $0x28] sm:$0xff]
    %v108 = vld [vmem:[#allocation2 + $0x30] sm:$0xff]
    %v109 = vld [vmem:[#allocation2 + $0x38] sm:$0xff]
    %v110 = vld [vmem:[#allocation2 + $0x40] sm:$0xff]
    %v111 = vld [vmem:[#allocation2 + $0x48] sm:$0xff]
    %v112 = vld [vmem:[#allocation2 + $0x50] sm:$0xff]
    %v113 = vld [vmem:[#allocation2 + $0x58] sm:$0xff]
    %v114 = vld [vmem:[#allocation2 + $0x60] sm:$0xff]
    %v115 = vld [vmem:[#allocation2 + $0x68] sm:$0xff]
    %v116 = vld [vmem:[#allocation2 + $0x70] sm:$0xff]
    %v117 = vld [vmem:[#allocation2 + $0x78] sm:$0xff]
    %v118 = vld [vmem:[#allocation2 + $0x80] sm:$0xff]
    %v119 = vld [vmem:[#allocation2 + $0x88] sm:$0xff]
    %v120 = vld [vmem:[#allocation2 + $0x90] sm:$0xff]
    %v121 = vld [vmem:[#allocation2 + $0x98] sm:$0xff]
    %v122 = vld [vmem:[#allocation2 + $0xa0] sm:$0xff]
    %v123 = vld [vmem:[#allocation2 + $0xa8] sm:$0xff]
    %v124 = vld [vmem:[#allocation2 + $0xb0] sm:$0xff]
    %v125 = vld [vmem:[#allocation2 + $0xb8] sm:$0xff]
    %v126 = vld [vmem:[#allocation2 + $0xc0] sm:$0xff]
    %v127 = vld [vmem:[#allocation2 + $0xc8] sm:$0xff]
    %v128 = vld [vmem:[#allocation2 + $0xd0] sm:$0xff]
    %v129 = vld [vmem:[#allocation2 + $0xd8] sm:$0xff]
    %v130 = vld [vmem:[#allocation2 + $0xe0] sm:$0xff]
    %v131 = vld [vmem:[#allocation2 + $0xe8] sm:$0xff]
    %v132 = vld [vmem:[#allocation2 + $0xf0] sm:$0xff]
    %v133 = vld [vmem:[#allocation2 + $0xf8] sm:$0xff]
    %v134 = vld [vmem:[#allocation2 + $0x100] sm:$0xff]
    %v135 = vld [vmem:[#allocation2 + $0x108] sm:$0xff]
    %v136 = vld [vmem:[#allocation2 + $0x110] sm:$0xff]
    %v137 = vld [vmem:[#allocation2 + $0x118] sm:$0xff]
    %v138 = vld [vmem:[#allocation2 + $0x120] sm:$0xff]
    %v139 = vld [vmem:[#allocation2 + $0x128] sm:$0xff]
    %v140 = vld [vmem:[#allocation2 + $0x130] sm:$0xff]
    %v141 = vld [vmem:[#allocation2 + $0x138] sm:$0xff]
    %v142 = vld [vmem:[#allocation2 + $0x140] sm:$0xff]
    %v143 = vld [vmem:[#allocation2 + $0x148] sm:$0xff]
    %v144 = vld [vmem:[#allocation2 + $0x150] sm:$0xff]
    %v145 = vld [vmem:[#allocation2 + $0x158] sm:$0xff]
    %v146 = vld [vmem:[#allocation2 + $0x160] sm:$0xff]
    %v147 = vld [vmem:[#allocation2 + $0x168] sm:$0xff]
    %v148 = vld [vmem:[#allocation2 + $0x170] sm:$0xff]
    %v149 = vld [vmem:[#allocation2 + $0x178] sm:$0xff]
    %v150 = vld [vmem:[#allocation2 + $0x180] sm:$0xff]
    %v151 = vld [vmem:[#allocation2 + $0x188] sm:$0xff]
    %v152 = vld [vmem:[#allocation2 + $0x190] sm:$0xff]
    %v153 = vld [vmem:[#allocation2 + $0x198] sm:$0xff]
    %v154 = vld [vmem:[#allocation2 + $0x1a0] sm:$0xff]
    %v155 = vld [vmem:[#allocation2 + $0x1a8] sm:$0xff]
    %v156 = vld [vmem:[#allocation2 + $0x1b0] sm:$0xff]
    %v157 = vld [vmem:[#allocation2 + $0x1b8] sm:$0xff]
    %v158 = vld [vmem:[#allocation2 + $0x1c0] sm:$0xff]
    %v159 = vld [vmem:[#allocation2 + $0x1c8] sm:$0xff]
    %v160 = vld [vmem:[#allocation2 + $0x1d0] sm:$0xff]
    %v161 = vld [vmem:[#allocation2 + $0x1d8] sm:$0xff]
    %v162 = vld [vmem:[#allocation2 + $0x1e0] sm:$0xff]
    %v163 = vld [vmem:[#allocation2 + $0x1e8] sm:$0xff]
    %v164 = vld [vmem:[#allocation2 + $0x1f0] sm:$0xff]
    %v165 = vld [vmem:[#allocation2 + $0x1f8] sm:$0xff]
    %v166 = vld [vmem:[#allocation2 + $0x200] sm:$0xff]
    %v167 = vld [vmem:[#allocation2 + $0x208] sm:$0xff]
    %v168 = vld [vmem:[#allocation2 + $0x210] sm:$0xff]
    %v169 = vld [vmem:[#allocation2 + $0x218] sm:$0xff]
    %v170 = vld [vmem:[#allocation2 + $0x220] sm:$0xff]
    %v171 = vld [vmem:[#allocation2 + $0x228] sm:$0xff]
    %v172 = vld [vmem:[#allocation2 + $0x230] sm:$0xff]
    %v173 = vld [vmem:[#allocation2 + $0x238] sm:$0xff]
    %v174 = vld [vmem:[#allocation2 + $0x240] sm:$0xff]
    %v175 = vld [vmem:[#allocation2 + $0x248] sm:$0xff]
    %v176 = vld [vmem:[#allocation2 + $0x250] sm:$0xff]
    %v177 = vld [vmem:[#allocation2 + $0x258] sm:$0xff]
    %v178 = vld [vmem:[#allocation2 + $0x260] sm:$0xff]
    %v179 = vld [vmem:[#allocation2 + $0x268] sm:$0xff]
    %v180 = vld [vmem:[#allocation2 + $0x270] sm:$0xff]
    %v181 = vld [vmem:[#allocation2 + $0x278] sm:$0xff]
    %v182 = vld [vmem:[#allocation2 + $0x280] sm:$0xff]
    %v183 = vld [vmem:[#allocation2 + $0x288] sm:$0xff]
    %v184 = vld [vmem:[#allocation2 + $0x290] sm:$0xff]
    %v185 = vld [vmem:[#allocation2 + $0x298] sm:$0xff]
    %v186 = vld [vmem:[#allocation2 + $0x2a0] sm:$0xff]
    %v187 = vld [vmem:[#allocation2 + $0x2a8] sm:$0xff]
    %v188 = vld [vmem:[#allocation2 + $0x2b0] sm:$0xff]
    %v189 = vld [vmem:[#allocation2 + $0x2b8] sm:$0xff]
    %v190 = vld [vmem:[#allocation2 + $0x2c0] sm:$0xff]
    %v191 = vld [vmem:[#allocation2 + $0x2c8] sm:$0xff]
    %v192 = vld [vmem:[#allocation2 + $0x2d0] sm:$0xff]
    %v193 = vld [vmem:[#allocation2 + $0x2d8] sm:$0xff]
    %v194 = vld [vmem:[#allocation2 + $0x2e0] sm:$0xff]
    %v195 = vld [vmem:[#allocation2 + $0x2e8] sm:$0xff]
    %v196 = vld [vmem:[#allocation2 + $0x2f0] sm:$0xff]
    %v197 = vld [vmem:[#allocation2 + $0x2f8] sm:$0xff]
    %v198 = vld [vmem:[#allocation2 + $0x300] sm:$0xff]
    %v199 = vld [vmem:[#allocation2 + $0x308] sm:$0xff]
    %v200 = vld [vmem:[#allocation2 + $0x310] sm:$0xff]
    %v201 = vld [vmem:[#allocation2 + $0x318] sm:$0xff]
    %v202 = vld [vmem:[#allocation2 + $0x320] sm:$0xff]
    %v203 = vld [vmem:[#allocation2 + $0x328] sm:$0xff]
    %v204 = vld [vmem:[#allocation2 + $0x330] sm:$0xff]
    %v205 = vld [vmem:[#allocation2 + $0x338] sm:$0xff]
    %v206 = vld [vmem:[#allocation2 + $0x340] sm:$0xff]
    %v207 = vld [vmem:[#allocation2 + $0x348] sm:$0xff]
    %v208 = vld [vmem:[#allocation2 + $0x350] sm:$0xff]
    %v209 = vld [vmem:[#allocation2 + $0x358] sm:$0xff]
    %v210 = vld [vmem:[#allocation2 + $0x360] sm:$0xff]
    %v211 = vld [vmem:[#allocation2 + $0x368] sm:$0xff]
    %v212 = vld [vmem:[#allocation2 + $0x370] sm:$0xff]
    %v213 = vld [vmem:[#allocation2 + $0x378] sm:$0xff]
    %v214 = vld [vmem:[#allocation2 + $0x380] sm:$0xff]
    %v215 = vld [vmem:[#allocation2 + $0x388] sm:$0xff]
    %v216 = vld [vmem:[#allocation2 + $0x390] sm:$0xff]
    %v217 = vld [vmem:[#allocation2 + $0x398] sm:$0xff]
    %v218 = vld [vmem:[#allocation2 + $0x3a0] sm:$0xff]
    %v219 = vld [vmem:[#allocation2 + $0x3a8] sm:$0xff]
    %v220 = vld [vmem:[#allocation2 + $0x3b0] sm:$0xff]
    %v221 = vld [vmem:[#allocation2 + $0x3b8] sm:$0xff]
    %v222 = vld [vmem:[#allocation2 + $0x3c0] sm:$0xff]
    %v223 = vld [vmem:[#allocation2 + $0x3c8] sm:$0xff]
    %v224 = vld [vmem:[#allocation2 + $0x3d0] sm:$0xff]
    %v225 = vld [vmem:[#allocation2 + $0x3d8] sm:$0xff]
    %v226 = vld [vmem:[#allocation2 + $0x3e0] sm:$0xff]
    %v227 = vld [vmem:[#allocation2 + $0x3e8] sm:$0xff]
    %v228 = vld [vmem:[#allocation2 + $0x3f0] sm:$0xff]
    %v229 = vld [vmem:[#allocation2 + $0x3f8] sm:$0xff]
    %v358 = vunpack.c.l.b16 %v102
    %v359 = vunpack.c.h.b16 %v102
    %v360 = vunpack.c.l.b16 %v103
    %v361 = vunpack.c.h.b16 %v103
    %v362 = vunpack.c.l.b16 %v104
    %v363 = vunpack.c.h.b16 %v104
    %v364 = vunpack.c.l.b16 %v105
    %v365 = vunpack.c.h.b16 %v105
    %v366 = vunpack.c.l.b16 %v106
    %v367 = vunpack.c.h.b16 %v106
    %v368 = vunpack.c.l.b16 %v107
    %v369 = vunpack.c.h.b16 %v107
    %v370 = vunpack.c.l.b16 %v108
    %v371 = vunpack.c.h.b16 %v108
    %v372 = vunpack.c.l.b16 %v109
    %v373 = vunpack.c.h.b16 %v109
    %v374 = vunpack.c.l.b16 %v110
    %v375 = vunpack.c.h.b16 %v110
    %v376 = vunpack.c.l.b16 %v111
    %v377 = vunpack.c.h.b16 %v111
    %v378 = vunpack.c.l.b16 %v112
    %v379 = vunpack.c.h.b16 %v112
    %v380 = vunpack.c.l.b16 %v113
    %v381 = vunpack.c.h.b16 %v113
    %v382 = vunpack.c.l.b16 %v114
    %v383 = vunpack.c.h.b16 %v114
    %v384 = vunpack.c.l.b16 %v115
    %v385 = vunpack.c.h.b16 %v115
    %v386 = vunpack.c.l.b16 %v116
    %v387 = vunpack.c.h.b16 %v116
    %v388 = vunpack.c.l.b16 %v117
    %v389 = vunpack.c.h.b16 %v117
    %v390 = vunpack.c.l.b16 %v118
    %v391 = vunpack.c.h.b16 %v118
    %v392 = vunpack.c.l.b16 %v119
    %v393 = vunpack.c.h.b16 %v119
    %v394 = vunpack.c.l.b16 %v120
    %v395 = vunpack.c.h.b16 %v120
    %v396 = vunpack.c.l.b16 %v121
    %v397 = vunpack.c.h.b16 %v121
    %v398 = vunpack.c.l.b16 %v122
    %v399 = vunpack.c.h.b16 %v122
    %v400 = vunpack.c.l.b16 %v123
    %v401 = vunpack.c.h.b16 %v123
    %v402 = vunpack.c.l.b16 %v124
    %v403 = vunpack.c.h.b16 %v124
    %v404 = vunpack.c.l.b16 %v125
    %v405 = vunpack.c.h.b16 %v125
    %v406 = vunpack.c.l.b16 %v126
    %v407 = vunpack.c.h.b16 %v126
    %v408 = vunpack.c.l.b16 %v127
    %v409 = vunpack.c.h.b16 %v127
    %v410 = vunpack.c.l.b16 %v128
    %v411 = vunpack.c.h.b16 %v128
    %v412 = vunpack.c.l.b16 %v129
    %v413 = vunpack.c.h.b16 %v129
    %v414 = vunpack.c.l.b16 %v130
    %v415 = vunpack.c.h.b16 %v130
    %v416 = vunpack.c.l.b16 %v131
    %v417 = vunpack.c.h.b16 %v131
    %v418 = vunpack.c.l.b16 %v132
    %v419 = vunpack.c.h.b16 %v132
    %v420 = vunpack.c.l.b16 %v133
    %v421 = vunpack.c.h.b16 %v133
    %v422 = vunpack.c.l.b16 %v134
    %v423 = vunpack.c.h.b16 %v134
    %v424 = vunpack.c.l.b16 %v135
    %v425 = vunpack.c.h.b16 %v135
    %v426 = vunpack.c.l.b16 %v136
    %v427 = vunpack.c.h.b16 %v136
    %v428 = vunpack.c.l.b16 %v137
    %v429 = vunpack.c.h.b16 %v137
    %v430 = vunpack.c.l.b16 %v138
    %v431 = vunpack.c.h.b16 %v138
    %v432 = vunpack.c.l.b16 %v139
    %v433 = vunpack.c.h.b16 %v139
    %v434 = vunpack.c.l.b16 %v140
    %v435 = vunpack.c.h.b16 %v140
    %v436 = vunpack.c.l.b16 %v141
    %v437 = vunpack.c.h.b16 %v141
    %v438 = vunpack.c.l.b16 %v142
    %v439 = vunpack.c.h.b16 %v142
    %v440 = vunpack.c.l.b16 %v143
    %v441 = vunpack.c.h.b16 %v143
    %v442 = vunpack.c.l.b16 %v144
    %v443 = vunpack.c.h.b16 %v144
    %v444 = vunpack.c.l.b16 %v145
    %v445 = vunpack.c.h.b16 %v145
    %v446 = vunpack.c.l.b16 %v146
    %v447 = vunpack.c.h.b16 %v146
    %v448 = vunpack.c.l.b16 %v147
    %v449 = vunpack.c.h.b16 %v147
    %v450 = vunpack.c.l.b16 %v148
    %v451 = vunpack.c.h.b16 %v148
    %v452 = vunpack.c.l.b16 %v149
    %v453 = vunpack.c.h.b16 %v149
    %v454 = vunpack.c.l.b16 %v150
    %v455 = vunpack.c.h.b16 %v150
    %v456 = vunpack.c.l.b16 %v151
    %v457 = vunpack.c.h.b16 %v151
    %v458 = vunpack.c.l.b16 %v152
    %v459 = vunpack.c.h.b16 %v152
    %v460 = vunpack.c.l.b16 %v153
    %v461 = vunpack.c.h.b16 %v153
    %v462 = vunpack.c.l.b16 %v154
    %v463 = vunpack.c.h.b16 %v154
    %v464 = vunpack.c.l.b16 %v155
    %v465 = vunpack.c.h.b16 %v155
    %v466 = vunpack.c.l.b16 %v156
    %v467 = vunpack.c.h.b16 %v156
    %v468 = vunpack.c.l.b16 %v157
    %v469 = vunpack.c.h.b16 %v157
    %v470 = vunpack.c.l.b16 %v158
    %v471 = vunpack.c.h.b16 %v158
    %v472 = vunpack.c.l.b16 %v159
    %v473 = vunpack.c.h.b16 %v159
    %v474 = vunpack.c.l.b16 %v160
    %v475 = vunpack.c.h.b16 %v160
    %v476 = vunpack.c.l.b16 %v161
    %v477 = vunpack.c.h.b16 %v161
    %v478 = vunpack.c.l.b16 %v162
    %v479 = vunpack.c.h.b16 %v162
    %v480 = vunpack.c.l.b16 %v163
    %v481 = vunpack.c.h.b16 %v163
    %v482 = vunpack.c.l.b16 %v164
    %v483 = vunpack.c.h.b16 %v164
    %v484 = vunpack.c.l.b16 %v165
    %v485 = vunpack.c.h.b16 %v165
    %v486 = vunpack.c.l.b16 %v166
    %v487 = vunpack.c.h.b16 %v166
    %v488 = vunpack.c.l.b16 %v167
    %v489 = vunpack.c.h.b16 %v167
    %v490 = vunpack.c.l.b16 %v168
    %v491 = vunpack.c.h.b16 %v168
    %v492 = vunpack.c.l.b16 %v169
    %v493 = vunpack.c.h.b16 %v169
    %v494 = vunpack.c.l.b16 %v170
    %v495 = vunpack.c.h.b16 %v170
    %v496 = vunpack.c.l.b16 %v171
    %v497 = vunpack.c.h.b16 %v171
    %v498 = vunpack.c.l.b16 %v172
    %v499 = vunpack.c.h.b16 %v172
    %v500 = vunpack.c.l.b16 %v173
    %v501 = vunpack.c.h.b16 %v173
    %v502 = vunpack.c.l.b16 %v174
    %v503 = vunpack.c.h.b16 %v174
    %v504 = vunpack.c.l.b16 %v175
    %v505 = vunpack.c.h.b16 %v175
    %v506 = vunpack.c.l.b16 %v176
    %v507 = vunpack.c.h.b16 %v176
    %v508 = vunpack.c.l.b16 %v177
    %v509 = vunpack.c.h.b16 %v177
    %v510 = vunpack.c.l.b16 %v178
    %v511 = vunpack.c.h.b16 %v178
    %v512 = vunpack.c.l.b16 %v179
    %v513 = vunpack.c.h.b16 %v179
    %v514 = vunpack.c.l.b16 %v180
    %v515 = vunpack.c.h.b16 %v180
    %v516 = vunpack.c.l.b16 %v181
    %v517 = vunpack.c.h.b16 %v181
    %v518 = vunpack.c.l.b16 %v182
    %v519 = vunpack.c.h.b16 %v182
    %v520 = vunpack.c.l.b16 %v183
    %v521 = vunpack.c.h.b16 %v183
    %v522 = vunpack.c.l.b16 %v184
    %v523 = vunpack.c.h.b16 %v184
    %v524 = vunpack.c.l.b16 %v185
    %v525 = vunpack.c.h.b16 %v185
    %v526 = vunpack.c.l.b16 %v186
    %v527 = vunpack.c.h.b16 %v186
    %v528 = vunpack.c.l.b16 %v187
    %v529 = vunpack.c.h.b16 %v187
    %v530 = vunpack.c.l.b16 %v188
    %v531 = vunpack.c.h.b16 %v188
    %v532 = vunpack.c.l.b16 %v189
    %v533 = vunpack.c.h.b16 %v189
    %v534 = vunpack.c.l.b16 %v190
    %v535 = vunpack.c.h.b16 %v190
    %v536 = vunpack.c.l.b16 %v191
    %v537 = vunpack.c.h.b16 %v191
    %v538 = vunpack.c.l.b16 %v192
    %v539 = vunpack.c.h.b16 %v192
    %v540 = vunpack.c.l.b16 %v193
    %v541 = vunpack.c.h.b16 %v193
    %v542 = vunpack.c.l.b16 %v194
    %v543 = vunpack.c.h.b16 %v194
    %v544 = vunpack.c.l.b16 %v195
    %v545 = vunpack.c.h.b16 %v195
    %v546 = vunpack.c.l.b16 %v196
    %v547 = vunpack.c.h.b16 %v196
    %v548 = vunpack.c.l.b16 %v197
    %v549 = vunpack.c.h.b16 %v197
    %v550 = vunpack.c.l.b16 %v198
    %v551 = vunpack.c.h.b16 %v198
    %v552 = vunpack.c.l.b16 %v199
    %v553 = vunpack.c.h.b16 %v199
    %v554 = vunpack.c.l.b16 %v200
    %v555 = vunpack.c.h.b16 %v200
    %v556 = vunpack.c.l.b16 %v201
    %v557 = vunpack.c.h.b16 %v201
    %v558 = vunpack.c.l.b16 %v202
    %v559 = vunpack.c.h.b16 %v202
    %v560 = vunpack.c.l.b16 %v203
    %v561 = vunpack.c.h.b16 %v203
    %v562 = vunpack.c.l.b16 %v204
    %v563 = vunpack.c.h.b16 %v204
    %v564 = vunpack.c.l.b16 %v205
    %v565 = vunpack.c.h.b16 %v205
    %v566 = vunpack.c.l.b16 %v206
    %v567 = vunpack.c.h.b16 %v206
    %v568 = vunpack.c.l.b16 %v207
    %v569 = vunpack.c.h.b16 %v207
    %v570 = vunpack.c.l.b16 %v208
    %v571 = vunpack.c.h.b16 %v208
    %v572 = vunpack.c.l.b16 %v209
    %v573 = vunpack.c.h.b16 %v209
    %v574 = vunpack.c.l.b16 %v210
    %v575 = vunpack.c.h.b16 %v210
    %v576 = vunpack.c.l.b16 %v211
    %v577 = vunpack.c.h.b16 %v211
    %v578 = vunpack.c.l.b16 %v212
    %v579 = vunpack.c.h.b16 %v212
    %v580 = vunpack.c.l.b16 %v213
    %v581 = vunpack.c.h.b16 %v213
    %v582 = vunpack.c.l.b16 %v214
    %v583 = vunpack.c.h.b16 %v214
    %v584 = vunpack.c.l.b16 %v215
    %v585 = vunpack.c.h.b16 %v215
    %v586 = vunpack.c.l.b16 %v216
    %v587 = vunpack.c.h.b16 %v216
    %v588 = vunpack.c.l.b16 %v217
    %v589 = vunpack.c.h.b16 %v217
    %v590 = vunpack.c.l.b16 %v218
    %v591 = vunpack.c.h.b16 %v218
    %v592 = vunpack.c.l.b16 %v219
    %v593 = vunpack.c.h.b16 %v219
    %v594 = vunpack.c.l.b16 %v220
    %v595 = vunpack.c.h.b16 %v220
    %v596 = vunpack.c.l.b16 %v221
    %v597 = vunpack.c.h.b16 %v221
    %v598 = vunpack.c.l.b16 %v222
    %v599 = vunpack.c.h.b16 %v222
    %v600 = vunpack.c.l.b16 %v223
    %v601 = vunpack.c.h.b16 %v223
    %v602 = vunpack.c.l.b16 %v224
    %v603 = vunpack.c.h.b16 %v224
    %v604 = vunpack.c.l.b16 %v225
    %v605 = vunpack.c.h.b16 %v225
    %v606 = vunpack.c.l.b16 %v226
    %v607 = vunpack.c.h.b16 %v226
    %v608 = vunpack.c.l.b16 %v227
    %v609 = vunpack.c.h.b16 %v227
    %v610 = vunpack.c.l.b16 %v228
    %v611 = vunpack.c.h.b16 %v228
    %v612 = vunpack.c.l.b16 %v229
    %v613 = vunpack.c.h.b16 %v229
    %v614 = vpack.c.b16 %v360, %v358
    %v615 = vpack.c.b16 %v361, %v359
    %v616 = vpack.c.b16 %v364, %v362
    %v617 = vpack.c.b16 %v365, %v363
    %v618 = vpack.c.b16 %v368, %v366
    %v619 = vpack.c.b16 %v369, %v367
    %v620 = vpack.c.b16 %v372, %v370
    %v621 = vpack.c.b16 %v373, %v371
    %v622 = vpack.c.b16 %v376, %v374
    %v623 = vpack.c.b16 %v377, %v375
    %v624 = vpack.c.b16 %v380, %v378
    %v625 = vpack.c.b16 %v381, %v379
    %v626 = vpack.c.b16 %v384, %v382
    %v627 = vpack.c.b16 %v385, %v383
    %v628 = vpack.c.b16 %v388, %v386
    %v629 = vpack.c.b16 %v389, %v387
    %v630 = vpack.c.b16 %v392, %v390
    %v631 = vpack.c.b16 %v393, %v391
    %v632 = vpack.c.b16 %v396, %v394
    %v633 = vpack.c.b16 %v397, %v395
    %v634 = vpack.c.b16 %v400, %v398
    %v635 = vpack.c.b16 %v401, %v399
    %v636 = vpack.c.b16 %v404, %v402
    %v637 = vpack.c.b16 %v405, %v403
    %v638 = vpack.c.b16 %v408, %v406
    %v639 = vpack.c.b16 %v409, %v407
    %v640 = vpack.c.b16 %v412, %v410
    %v641 = vpack.c.b16 %v413, %v411
    %v642 = vpack.c.b16 %v416, %v414
    %v643 = vpack.c.b16 %v417, %v415
    %v644 = vpack.c.b16 %v420, %v418
    %v645 = vpack.c.b16 %v421, %v419
    %v646 = vpack.c.b16 %v424, %v422
    %v647 = vpack.c.b16 %v425, %v423
    %v648 = vpack.c.b16 %v428, %v426
    %v649 = vpack.c.b16 %v429, %v427
    %v650 = vpack.c.b16 %v432, %v430
    %v651 = vpack.c.b16 %v433, %v431
    %v652 = vpack.c.b16 %v436, %v434
    %v653 = vpack.c.b16 %v437, %v435
    %v654 = vpack.c.b16 %v440, %v438
    %v655 = vpack.c.b16 %v441, %v439
    %v656 = vpack.c.b16 %v444, %v442
    %v657 = vpack.c.b16 %v445, %v443
    %v658 = vpack.c.b16 %v448, %v446
    %v659 = vpack.c.b16 %v449, %v447
    %v660 = vpack.c.b16 %v452, %v450
    %v661 = vpack.c.b16 %v453, %v451
    %v662 = vpack.c.b16 %v456, %v454
    %v663 = vpack.c.b16 %v457, %v455
    %v664 = vpack.c.b16 %v460, %v458
    %v665 = vpack.c.b16 %v461, %v459
    %v666 = vpack.c.b16 %v464, %v462
    %v667 = vpack.c.b16 %v465, %v463
    %v668 = vpack.c.b16 %v468, %v466
    %v669 = vpack.c.b16 %v469, %v467
    %v670 = vpack.c.b16 %v472, %v470
    %v671 = vpack.c.b16 %v473, %v471
    %v672 = vpack.c.b16 %v476, %v474
    %v673 = vpack.c.b16 %v477, %v475
    %v674 = vpack.c.b16 %v480, %v478
    %v675 = vpack.c.b16 %v481, %v479
    %v676 = vpack.c.b16 %v484, %v482
    %v677 = vpack.c.b16 %v485, %v483
    %v678 = vpack.c.b16 %v488, %v486
    %v679 = vpack.c.b16 %v489, %v487
    %v680 = vpack.c.b16 %v492, %v490
    %v681 = vpack.c.b16 %v493, %v491
    %v682 = vpack.c.b16 %v496, %v494
    %v683 = vpack.c.b16 %v497, %v495
    %v684 = vpack.c.b16 %v500, %v498
    %v685 = vpack.c.b16 %v501, %v499
    %v686 = vpack.c.b16 %v504, %v502
    %v687 = vpack.c.b16 %v505, %v503
    %v688 = vpack.c.b16 %v508, %v506
    %v689 = vpack.c.b16 %v509, %v507
    %v690 = vpack.c.b16 %v512, %v510
    %v691 = vpack.c.b16 %v513, %v511
    %v692 = vpack.c.b16 %v516, %v514
    %v693 = vpack.c.b16 %v517, %v515
    %v694 = vpack.c.b16 %v520, %v518
    %v695 = vpack.c.b16 %v521, %v519
    %v696 = vpack.c.b16 %v524, %v522
    %v697 = vpack.c.b16 %v525, %v523
    %v698 = vpack.c.b16 %v528, %v526
    %v699 = vpack.c.b16 %v529, %v527
    %v700 = vpack.c.b16 %v532, %v530
    %v701 = vpack.c.b16 %v533, %v531
    %v702 = vpack.c.b16 %v536, %v534
    %v703 = vpack.c.b16 %v537, %v535
    %v704 = vpack.c.b16 %v540, %v538
    %v705 = vpack.c.b16 %v541, %v539
    %v706 = vpack.c.b16 %v544, %v542
    %v707 = vpack.c.b16 %v545, %v543
    %v708 = vpack.c.b16 %v548, %v546
    %v709 = vpack.c.b16 %v549, %v547
    %v710 = vpack.c.b16 %v552, %v550
    %v711 = vpack.c.b16 %v553, %v551
    %v712 = vpack.c.b16 %v556, %v554
    %v713 = vpack.c.b16 %v557, %v555
    %v714 = vpack.c.b16 %v560, %v558
    %v715 = vpack.c.b16 %v561, %v559
    %v716 = vpack.c.b16 %v564, %v562
    %v717 = vpack.c.b16 %v565, %v563
    %v718 = vpack.c.b16 %v568, %v566
    %v719 = vpack.c.b16 %v569, %v567
    %v720 = vpack.c.b16 %v572, %v570
    %v721 = vpack.c.b16 %v573, %v571
    %v722 = vpack.c.b16 %v576, %v574
    %v723 = vpack.c.b16 %v577, %v575
    %v724 = vpack.c.b16 %v580, %v578
    %v725 = vpack.c.b16 %v581, %v579
    %v726 = vpack.c.b16 %v584, %v582
    %v727 = vpack.c.b16 %v585, %v583
    %v728 = vpack.c.b16 %v588, %v586
    %v729 = vpack.c.b16 %v589, %v587
    %v730 = vpack.c.b16 %v592, %v590
    %v731 = vpack.c.b16 %v593, %v591
    %v732 = vpack.c.b16 %v596, %v594
    %v733 = vpack.c.b16 %v597, %v595
    %v734 = vpack.c.b16 %v600, %v598
    %v735 = vpack.c.b16 %v601, %v599
    %v736 = vpack.c.b16 %v604, %v602
    %v737 = vpack.c.b16 %v605, %v603
    %v738 = vpack.c.b16 %v608, %v606
    %v739 = vpack.c.b16 %v609, %v607
    %v740 = vpack.c.b16 %v612, %v610
    %v741 = vpack.c.b16 %v613, %v611
    %870 = vmatpush.bf16.msra.mxu0 %v628
    %871 = vmatpush.bf16.msra.mxu0 %v626
    %872 = vmatpush.bf16.msra.mxu0 %v624
    %873 = vmatpush.bf16.msra.mxu0 %v622
    %874 = vmatpush.bf16.msra.mxu0 %v620
    %875 = vmatpush.bf16.msra.mxu0 %v618
    %876 = vmatpush.bf16.msra.mxu0 %v616
    %877 = vmatpush.bf16.msra.mxu0 %v614
    %878 = vmatmul.bf16.gmra.mxu0 %v94
    %v879 = vpop.f32.mrf.mxu0
    %v880 = vadd.f32 0.0, %v879
    %v881 = vpop.f32.mrf.mxu0
    %882 = vdwg.mxu0
    %883 = vmatpush.bf16.msra.mxu0 %v644
    %884 = vmatpush.bf16.msra.mxu0 %v642
    %885 = vmatpush.bf16.msra.mxu0 %v640
    %886 = vmatpush.bf16.msra.mxu0 %v638
    %887 = vmatpush.bf16.msra.mxu0 %v636
    %888 = vmatpush.bf16.msra.mxu0 %v634
    %889 = vmatpush.bf16.msra.mxu0 %v632
    %890 = vmatpush.bf16.msra.mxu0 %v630
    %891 = vmatmul.bf16.gmra.mxu0 %v95
    %v892 = vpop.f32.mrf.mxu0
    %v893 = vadd.f32 %v880, %v892
    %v894 = vpop.f32.mrf.mxu0
    %895 = vdwg.mxu0
    %896 = vmatpush.bf16.msra.mxu0 %v660
    %897 = vmatpush.bf16.msra.mxu0 %v658
    %898 = vmatpush.bf16.msra.mxu0 %v656
    %899 = vmatpush.bf16.msra.mxu0 %v654
    %900 = vmatpush.bf16.msra.mxu0 %v652
    %901 = vmatpush.bf16.msra.mxu0 %v650
    %902 = vmatpush.bf16.msra.mxu0 %v648
    %903 = vmatpush.bf16.msra.mxu0 %v646
    %904 = vmatmul.bf16.gmra.mxu0 %v96
    %v905 = vpop.f32.mrf.mxu0
    %v906 = vadd.f32 %v893, %v905
    %v907 = vpop.f32.mrf.mxu0
    %908 = vdwg.mxu0
    %909 = vmatpush.bf16.msra.mxu0 %v676
    %910 = vmatpush.bf16.msra.mxu0 %v674
    %911 = vmatpush.bf16.msra.mxu0 %v672
    %912 = vmatpush.bf16.msra.mxu0 %v670
    %913 = vmatpush.bf16.msra.mxu0 %v668
    %914 = vmatpush.bf16.msra.mxu0 %v666
    %915 = vmatpush.bf16.msra.mxu0 %v664
    %916 = vmatpush.bf16.msra.mxu0 %v662
    %917 = vmatmul.bf16.gmra.mxu0 %v97
    %v918 = vpop.f32.mrf.mxu0
    %v919 = vadd.f32 %v906, %v918
    %v920 = vpop.f32.mrf.mxu0
    %921 = vdwg.mxu0
    %922 = vmatpush.bf16.msra.mxu0 %v692
    %923 = vmatpush.bf16.msra.mxu0 %v690
    %924 = vmatpush.bf16.msra.mxu0 %v688
    %925 = vmatpush.bf16.msra.mxu0 %v686
    %926 = vmatpush.bf16.msra.mxu0 %v684
    %927 = vmatpush.bf16.msra.mxu0 %v682
    %928 = vmatpush.bf16.msra.mxu0 %v680
    %929 = vmatpush.bf16.msra.mxu0 %v678
    %930 = vmatmul.bf16.gmra.mxu0 %v98
    %v931 = vpop.f32.mrf.mxu0
    %v932 = vadd.f32 %v919, %v931
    %v933 = vpop.f32.mrf.mxu0
    %934 = vdwg.mxu0
    %935 = vmatpush.bf16.msra.mxu0 %v708
    %936 = vmatpush.bf16.msra.mxu0 %v706
    %937 = vmatpush.bf16.msra.mxu0 %v704
    %938 = vmatpush.bf16.msra.mxu0 %v702
    %939 = vmatpush.bf16.msra.mxu0 %v700
    %940 = vmatpush.bf16.msra.mxu0 %v698
    %941 = vmatpush.bf16.msra.mxu0 %v696
    %942 = vmatpush.bf16.msra.mxu0 %v694
    %943 = vmatmul.bf16.gmra.mxu0 %v99
    %v944 = vpop.f32.mrf.mxu0
    %v945 = vadd.f32 %v932, %v944
    %v946 = vpop.f32.mrf.mxu0
    %947 = vdwg.mxu0
    %948 = vmatpush.bf16.msra.mxu0 %v724
    %949 = vmatpush.bf16.msra.mxu0 %v722
    %950 = vmatpush.bf16.msra.mxu0 %v720
    %951 = vmatpush.bf16.msra.mxu0 %v718
    %952 = vmatpush.bf16.msra.mxu0 %v716
    %953 = vmatpush.bf16.msra.mxu0 %v714
    %954 = vmatpush.bf16.msra.mxu0 %v712
    %955 = vmatpush.bf16.msra.mxu0 %v710
    %956 = vmatmul.bf16.gmra.mxu0 %v100
    %v957 = vpop.f32.mrf.mxu0
    %v958 = vadd.f32 %v945, %v957
    %v959 = vpop.f32.mrf.mxu0
    %960 = vdwg.mxu0
    %961 = vmatpush.bf16.msra.mxu0 %v740
    %962 = vmatpush.bf16.msra.mxu0 %v738
    %963 = vmatpush.bf16.msra.mxu0 %v736
    %964 = vmatpush.bf16.msra.mxu0 %v734
    %965 = vmatpush.bf16.msra.mxu0 %v732
    %966 = vmatpush.bf16.msra.mxu0 %v730
    %967 = vmatpush.bf16.msra.mxu0 %v728
    %968 = vmatpush.bf16.msra.mxu0 %v726
    %969 = vmatmul.bf16.gmra.mxu0 %v101
    %v970 = vpop.f32.mrf.mxu0
    %v971 = vadd.f32 %v958, %v970
    %v972 = vpop.f32.mrf.mxu0
    %973 = vdwg.mxu0
    %974 = vmatpush.bf16.msra.mxu0 %v629
    %975 = vmatpush.bf16.msra.mxu0 %v627
    %976 = vmatpush.bf16.msra.mxu0 %v625
    %977 = vmatpush.bf16.msra.mxu0 %v623
    %978 = vmatpush.bf16.msra.mxu0 %v621
    %979 = vmatpush.bf16.msra.mxu0 %v619
    %980 = vmatpush.bf16.msra.mxu0 %v617
    %981 = vmatpush.bf16.msra.mxu0 %v615
    %982 = vmatmul.bf16.gmra.mxu0 %v94
    %v983 = vpop.f32.mrf.mxu0
    %v984 = vadd.f32 0.0, %v983
    %v985 = vpop.f32.mrf.mxu0
    %986 = vdwg.mxu0
    %987 = vmatpush.bf16.msra.mxu0 %v645
    %988 = vmatpush.bf16.msra.mxu0 %v643
    %989 = vmatpush.bf16.msra.mxu0 %v641
    %990 = vmatpush.bf16.msra.mxu0 %v639
    %991 = vmatpush.bf16.msra.mxu0 %v637
    %992 = vmatpush.bf16.msra.mxu0 %v635
    %993 = vmatpush.bf16.msra.mxu0 %v633
    %994 = vmatpush.bf16.msra.mxu0 %v631
    %995 = vmatmul.bf16.gmra.mxu0 %v95
    %v996 = vpop.f32.mrf.mxu0
    %v997 = vadd.f32 %v984, %v996
    %v998 = vpop.f32.mrf.mxu0
    %999 = vdwg.mxu0
    %1000 = vmatpush.bf16.msra.mxu0 %v661
    %1001 = vmatpush.bf16.msra.mxu0 %v659
    %1002 = vmatpush.bf16.msra.mxu0 %v657
    %1003 = vmatpush.bf16.msra.mxu0 %v655
    %1004 = vmatpush.bf16.msra.mxu0 %v653
    %1005 = vmatpush.bf16.msra.mxu0 %v651
    %1006 = vmatpush.bf16.msra.mxu0 %v649
    %1007 = vmatpush.bf16.msra.mxu0 %v647
    %1008 = vmatmul.bf16.gmra.mxu0 %v96
    %v1009 = vpop.f32.mrf.mxu0
    %v1010 = vadd.f32 %v997, %v1009
    %v1011 = vpop.f32.mrf.mxu0
    %1012 = vdwg.mxu0
    %1013 = vmatpush.bf16.msra.mxu0 %v677
    %1014 = vmatpush.bf16.msra.mxu0 %v675
    %1015 = vmatpush.bf16.msra.mxu0 %v673
    %1016 = vmatpush.bf16.msra.mxu0 %v671
    %1017 = vmatpush.bf16.msra.mxu0 %v669
    %1018 = vmatpush.bf16.msra.mxu0 %v667
    %1019 = vmatpush.bf16.msra.mxu0 %v665
    %1020 = vmatpush.bf16.msra.mxu0 %v663
    %1021 = vmatmul.bf16.gmra.mxu0 %v97
    %v1022 = vpop.f32.mrf.mxu0
    %v1023 = vadd.f32 %v1010, %v1022
    %v1024 = vpop.f32.mrf.mxu0
    %1025 = vdwg.mxu0
    %1026 = vmatpush.bf16.msra.mxu0 %v693
    %1027 = vmatpush.bf16.msra.mxu0 %v691
    %1028 = vmatpush.bf16.msra.mxu0 %v689
    %1029 = vmatpush.bf16.msra.mxu0 %v687
    %1030 = vmatpush.bf16.msra.mxu0 %v685
    %1031 = vmatpush.bf16.msra.mxu0 %v683
    %1032 = vmatpush.bf16.msra.mxu0 %v681
    %1033 = vmatpush.bf16.msra.mxu0 %v679
    %1034 = vmatmul.bf16.gmra.mxu0 %v98
    %v1035 = vpop.f32.mrf.mxu0
    %v1036 = vadd.f32 %v1023, %v1035
    %v1037 = vpop.f32.mrf.mxu0
    %1038 = vdwg.mxu0
    %1039 = vmatpush.bf16.msra.mxu0 %v709
    %1040 = vmatpush.bf16.msra.mxu0 %v707
    %1041 = vmatpush.bf16.msra.mxu0 %v705
    %1042 = vmatpush.bf16.msra.mxu0 %v703
    %1043 = vmatpush.bf16.msra.mxu0 %v701
    %1044 = vmatpush.bf16.msra.mxu0 %v699
    %1045 = vmatpush.bf16.msra.mxu0 %v697
    %1046 = vmatpush.bf16.msra.mxu0 %v695
    %1047 = vmatmul.bf16.gmra.mxu0 %v99
    %v1048 = vpop.f32.mrf.mxu0
    %v1049 = vadd.f32 %v1036, %v1048
    %v1050 = vpop.f32.mrf.mxu0
    %1051 = vdwg.mxu0
    %1052 = vmatpush.bf16.msra.mxu0 %v725
    %1053 = vmatpush.bf16.msra.mxu0 %v723
    %1054 = vmatpush.bf16.msra.mxu0 %v721
    %1055 = vmatpush.bf16.msra.mxu0 %v719
    %1056 = vmatpush.bf16.msra.mxu0 %v717
    %1057 = vmatpush.bf16.msra.mxu0 %v715
    %1058 = vmatpush.bf16.msra.mxu0 %v713
    %1059 = vmatpush.bf16.msra.mxu0 %v711
    %1060 = vmatmul.bf16.gmra.mxu0 %v100
    %v1061 = vpop.f32.mrf.mxu0
    %v1062 = vadd.f32 %v1049, %v1061
    %v1063 = vpop.f32.mrf.mxu0
    %1064 = vdwg.mxu0
    %1065 = vmatpush.bf16.msra.mxu0 %v741
    %1066 = vmatpush.bf16.msra.mxu0 %v739
    %1067 = vmatpush.bf16.msra.mxu0 %v737
    %1068 = vmatpush.bf16.msra.mxu0 %v735
    %1069 = vmatpush.bf16.msra.mxu0 %v733
    %1070 = vmatpush.bf16.msra.mxu0 %v731
    %1071 = vmatpush.bf16.msra.mxu0 %v729
    %1072 = vmatpush.bf16.msra.mxu0 %v727
    %1073 = vmatmul.bf16.gmra.mxu0 %v101
    %v1074 = vpop.f32.mrf.mxu0
    %v1075 = vadd.f32 %v1062, %v1074
    %v1076 = vpop.f32.mrf.mxu0
    %1077 = vdwg.mxu0
    %v1078 = vrot.slane %v971, 4
    %v1079 = vadd.f32 %v971, %v1078
    %v1080 = vrot.slane %v1079, 2
    %v1081 = vadd.f32 %v1079, %v1080
    %v1082 = vrot.slane %v1081, 1
    %v1083 = vadd.f32 %v1081, %v1082
    %v1084 = vrot.slane %v1075, 4
    %v1085 = vadd.f32 %v1075, %v1084
    %v1086 = vrot.slane %v1085, 2
    %v1087 = vadd.f32 %v1085, %v1086
    %v1088 = vrot.slane %v1087, 1
    %v1089 = vadd.f32 %v1087, %v1088
    %v1090 = vrcp.pop 8.0
    %v1091 = vmul.f32 8.0, %v1090
    %v1092 = vsub.f32 1.0, %v1091
    %v1093 = vmul.f32 %v1090, %v1092
    %v1094 = vadd.f32 %v1090, %v1093
    %vm1095 = vweird.f32 %v1090
    %v1096 = vsel %vm1095, %v1090, %v1094
    %v1097 = vmul.f32 %v1083, %v1096
    %v1098 = vmul.f32 %v1089, %v1096
    %v1099 = vsub.f32 %v971, %v1097
    %v1100 = vsub.f32 %v1075, %v1098
    %v1101 = vmul.f32 %v1099, %v1099
    %v1102 = vmul.f32 %v1100, %v1100
    %v1103 = vrot.slane %v1101, 4
    %v1104 = vadd.f32 %v1101, %v1103
    %v1105 = vrot.slane %v1104, 2
    %v1106 = vadd.f32 %v1104, %v1105
    %v1107 = vrot.slane %v1106, 1
    %v1108 = vadd.f32 %v1106, %v1107
    %v1109 = vrot.slane %v1102, 4
    %v1110 = vadd.f32 %v1102, %v1109
    %v1111 = vrot.slane %v1110, 2
    %v1112 = vadd.f32 %v1110, %v1111
    %v1113 = vrot.slane %v1112, 1
    %v1114 = vadd.f32 %v1112, %v1113
    %v1115 = vmul.f32 %v1108, %v1096
    %v1116 = vmul.f32 %v1114, %v1096
    %v1117 = vadd.f32 %v1115, 1e-05
    %v1118 = vadd.f32 %v1116, 1e-05
    %v1119 = vrsqrt.pop %v1117
    %v1120 = vmul.f32 %v1119, %v1117
    %v1121 = vmul.f32 %v1120, %v1119
    %v1122 = vmul.f32 0.5, %v1121
    %v1123 = vsub.f32 1.5, %v1122
    %v1124 = vmul.f32 %v1119, %v1123
    %vm1125 = vweird.f32 %v1117
    %vm1126 = vweird.f32 %v1119
    %vm1127 = vmor %vm1125, %vm1126
    %v1128 = vsel %vm1127, %v1119, %v1124
    %v1129 = vrsqrt.pop %v1118
    %v1130 = vmul.f32 %v1129, %v1118
    %v1131 = vmul.f32 %v1130, %v1129
    %v1132 = vmul.f32 0.5, %v1131
    %v1133 = vsub.f32 1.5, %v1132
    %v1134 = vmul.f32 %v1129, %v1133
    %vm1135 = vweird.f32 %v1118
    %vm1136 = vweird.f32 %v1129
    %vm1137 = vmor %vm1135, %vm1136
    %v1138 = vsel %vm1137, %v1129, %v1134
    %v1141 = vrot.slane %v1138, 7
    %vm1142 = vcmask 1040384
    %v1143 = vsel %vm1142, %v1128, %v1141
    %v1145 = vmul.f32 %v75, %v1143
    %v1147 = vperm.slane %v1145, 0
    %v1148 = vperm.slane %v1145, 1
    %v1151 = vmul.f32 %v971, %v1147
    %v1152 = vmul.f32 %v1075, %v1148
    %v1153 = vmul.f32 %v1097, %v1147
    %v1154 = vmul.f32 %v1098, %v1148
    %v1157 = vrot.slane %v1154, 7
    %v1158 = vsel %vm1142, %v1153, %v1157
    %v1160 = vsub.f32 %v77, %v1158
    %v1162 = vperm.slane %v1160, 0
    %v1163 = vperm.slane %v1160, 1
    %v1166 = vadd.f32 %v1151, %v1162
    %v1167 = vadd.f32 %v1152, %v1163
    %v1168 = vmax.f32 %v1166, 0.0
    %v1169 = vmax.f32 %v1167, 0.0
    %v1170 = vpack.c.bf16 %v1168, %v1168
    %v1171 = vpack.c.bf16 %v1169, %v1169
    %v1172 = vld [vmem:[#allocation5] sm:$0xff]
    %v1173 = vld [vmem:[#allocation5 + $0x8] sm:$0xff]
    %v1174 = vld [vmem:[#allocation5 + $0x10] sm:$0xff]
    %v1175 = vld [vmem:[#allocation5 + $0x18] sm:$0xff]
    %v1176 = vld [vmem:[#allocation5 + $0x20] sm:$0xff]
    %v1177 = vld [vmem:[#allocation5 + $0x28] sm:$0xff]
    %v1178 = vld [vmem:[#allocation5 + $0x30] sm:$0xff]
    %v1179 = vld [vmem:[#allocation5 + $0x38] sm:$0xff]
    %v1180 = vld [vmem:[#allocation5 + $0x40] sm:$0xff]
    %v1181 = vld [vmem:[#allocation5 + $0x48] sm:$0xff]
    %v1182 = vld [vmem:[#allocation5 + $0x50] sm:$0xff]
    %v1183 = vld [vmem:[#allocation5 + $0x58] sm:$0xff]
    %v1184 = vld [vmem:[#allocation5 + $0x60] sm:$0xff]
    %v1185 = vld [vmem:[#allocation5 + $0x68] sm:$0xff]
    %v1186 = vld [vmem:[#allocation5 + $0x70] sm:$0xff]
    %v1187 = vld [vmem:[#allocation5 + $0x78] sm:$0xff]
    %v1188 = vld [vmem:[#allocation5 + $0x80] sm:$0xff]
    %v1189 = vld [vmem:[#allocation5 + $0x88] sm:$0xff]
    %v1190 = vld [vmem:[#allocation5 + $0x90] sm:$0xff]
    %v1191 = vld [vmem:[#allocation5 + $0x98] sm:$0xff]
    %v1192 = vld [vmem:[#allocation5 + $0xa0] sm:$0xff]
    %v1193 = vld [vmem:[#allocation5 + $0xa8] sm:$0xff]
    %v1194 = vld [vmem:[#allocation5 + $0xb0] sm:$0xff]
    %v1195 = vld [vmem:[#allocation5 + $0xb8] sm:$0xff]
    %v1196 = vld [vmem:[#allocation5 + $0xc0] sm:$0xff]
    %v1197 = vld [vmem:[#allocation5 + $0xc8] sm:$0xff]
    %v1198 = vld [vmem:[#allocation5 + $0xd0] sm:$0xff]
    %v1199 = vld [vmem:[#allocation5 + $0xd8] sm:$0xff]
    %v1200 = vld [vmem:[#allocation5 + $0xe0] sm:$0xff]
    %v1201 = vld [vmem:[#allocation5 + $0xe8] sm:$0xff]
    %v1202 = vld [vmem:[#allocation5 + $0xf0] sm:$0xff]
    %v1203 = vld [vmem:[#allocation5 + $0xf8] sm:$0xff]
    %v1236 = vunpack.c.l.b16 %v1172
    %v1237 = vunpack.c.h.b16 %v1172
    %v1238 = vunpack.c.l.b16 %v1173
    %v1239 = vunpack.c.h.b16 %v1173
    %v1240 = vunpack.c.l.b16 %v1174
    %v1241 = vunpack.c.h.b16 %v1174
    %v1242 = vunpack.c.l.b16 %v1175
    %v1243 = vunpack.c.h.b16 %v1175
    %v1244 = vunpack.c.l.b16 %v1176
    %v1245 = vunpack.c.h.b16 %v1176
    %v1246 = vunpack.c.l.b16 %v1177
    %v1247 = vunpack.c.h.b16 %v1177
    %v1248 = vunpack.c.l.b16 %v1178
    %v1249 = vunpack.c.h.b16 %v1178
    %v1250 = vunpack.c.l.b16 %v1179
    %v1251 = vunpack.c.h.b16 %v1179
    %v1252 = vunpack.c.l.b16 %v1180
    %v1253 = vunpack.c.h.b16 %v1180
    %v1254 = vunpack.c.l.b16 %v1181
    %v1255 = vunpack.c.h.b16 %v1181
    %v1256 = vunpack.c.l.b16 %v1182
    %v1257 = vunpack.c.h.b16 %v1182
    %v1258 = vunpack.c.l.b16 %v1183
    %v1259 = vunpack.c.h.b16 %v1183
    %v1260 = vunpack.c.l.b16 %v1184
    %v1261 = vunpack.c.h.b16 %v1184
    %v1262 = vunpack.c.l.b16 %v1185
    %v1263 = vunpack.c.h.b16 %v1185
    %v1264 = vunpack.c.l.b16 %v1186
    %v1265 = vunpack.c.h.b16 %v1186
    %v1266 = vunpack.c.l.b16 %v1187
    %v1267 = vunpack.c.h.b16 %v1187
    %v1268 = vunpack.c.l.b16 %v1188
    %v1269 = vunpack.c.h.b16 %v1188
    %v1270 = vunpack.c.l.b16 %v1189
    %v1271 = vunpack.c.h.b16 %v1189
    %v1272 = vunpack.c.l.b16 %v1190
    %v1273 = vunpack.c.h.b16 %v1190
    %v1274 = vunpack.c.l.b16 %v1191
    %v1275 = vunpack.c.h.b16 %v1191
    %v1276 = vunpack.c.l.b16 %v1192
    %v1277 = vunpack.c.h.b16 %v1192
    %v1278 = vunpack.c.l.b16 %v1193
    %v1279 = vunpack.c.h.b16 %v1193
    %v1280 = vunpack.c.l.b16 %v1194
    %v1281 = vunpack.c.h.b16 %v1194
    %v1282 = vunpack.c.l.b16 %v1195
    %v1283 = vunpack.c.h.b16 %v1195
    %v1284 = vunpack.c.l.b16 %v1196
    %v1285 = vunpack.c.h.b16 %v1196
    %v1286 = vunpack.c.l.b16 %v1197
    %v1287 = vunpack.c.h.b16 %v1197
    %v1288 = vunpack.c.l.b16 %v1198
    %v1289 = vunpack.c.h.b16 %v1198
    %v1290 = vunpack.c.l.b16 %v1199
    %v1291 = vunpack.c.h.b16 %v1199
    %v1292 = vunpack.c.l.b16 %v1200
    %v1293 = vunpack.c.h.b16 %v1200
    %v1294 = vunpack.c.l.b16 %v1201
    %v1295 = vunpack.c.h.b16 %v1201
    %v1296 = vunpack.c.l.b16 %v1202
    %v1297 = vunpack.c.h.b16 %v1202
    %v1298 = vunpack.c.l.b16 %v1203
    %v1299 = vunpack.c.h.b16 %v1203
    %v1300 = vpack.c.b16 %v1238, %v1236
    %v1301 = vpack.c.b16 %v1239, %v1237
    %v1302 = vpack.c.b16 %v1242, %v1240
    %v1303 = vpack.c.b16 %v1243, %v1241
    %v1304 = vpack.c.b16 %v1246, %v1244
    %v1305 = vpack.c.b16 %v1247, %v1245
    %v1306 = vpack.c.b16 %v1250, %v1248
    %v1307 = vpack.c.b16 %v1251, %v1249
    %v1308 = vpack.c.b16 %v1254, %v1252
    %v1309 = vpack.c.b16 %v1255, %v1253
    %v1310 = vpack.c.b16 %v1258, %v1256
    %v1311 = vpack.c.b16 %v1259, %v1257
    %v1312 = vpack.c.b16 %v1262, %v1260
    %v1313 = vpack.c.b16 %v1263, %v1261
    %v1314 = vpack.c.b16 %v1266, %v1264
    %v1315 = vpack.c.b16 %v1267, %v1265
    %v1316 = vpack.c.b16 %v1270, %v1268
    %v1317 = vpack.c.b16 %v1271, %v1269
    %v1318 = vpack.c.b16 %v1274, %v1272
    %v1319 = vpack.c.b16 %v1275, %v1273
    %v1320 = vpack.c.b16 %v1278, %v1276
    %v1321 = vpack.c.b16 %v1279, %v1277
    %v1322 = vpack.c.b16 %v1282, %v1280
    %v1323 = vpack.c.b16 %v1283, %v1281
    %v1324 = vpack.c.b16 %v1286, %v1284
    %v1325 = vpack.c.b16 %v1287, %v1285
    %v1326 = vpack.c.b16 %v1290, %v1288
    %v1327 = vpack.c.b16 %v1291, %v1289
    %v1328 = vpack.c.b16 %v1294, %v1292
    %v1329 = vpack.c.b16 %v1295, %v1293
    %v1330 = vpack.c.b16 %v1298, %v1296
    %v1331 = vpack.c.b16 %v1299, %v1297
    %1364 = vmatpush.bf16.msra.mxu0 %v1314
    %1365 = vmatpush.bf16.msra.mxu0 %v1312
    %1366 = vmatpush.bf16.msra.mxu0 %v1310
    %1367 = vmatpush.bf16.msra.mxu0 %v1308
    %1368 = vmatpush.bf16.msra.mxu0 %v1306
    %1369 = vmatpush.bf16.msra.mxu0 %v1304
    %1370 = vmatpush.bf16.msra.mxu0 %v1302
    %1371 = vmatpush.bf16.msra.mxu0 %v1300
    %1372 = vmatmul.bf16.gmra.mxu0 %v1170
    %v1373 = vpop.f32.mrf.mxu0
    %v1374 = vadd.f32 0.0, %v1373
    %v1375 = vpop.f32.mrf.mxu0
    %1376 = vdwg.mxu0
    %1377 = vmatpush.bf16.msra.mxu0 %v1330
    %1378 = vmatpush.bf16.msra.mxu0 %v1328
    %1379 = vmatpush.bf16.msra.mxu0 %v1326
    %1380 = vmatpush.bf16.msra.mxu0 %v1324
    %1381 = vmatpush.bf16.msra.mxu0 %v1322
    %1382 = vmatpush.bf16.msra.mxu0 %v1320
    %1383 = vmatpush.bf16.msra.mxu0 %v1318
    %1384 = vmatpush.bf16.msra.mxu0 %v1316
    %1385 = vmatmul.bf16.gmra.mxu0 %v1171
    %v1386 = vpop.f32.mrf.mxu0
    %v1387 = vadd.f32 %v1374, %v1386
    %v1388 = vpop.f32.mrf.mxu0
    %1389 = vdwg.mxu0
    %1390 = vmatpush.bf16.msra.mxu0 %v1315
    %1391 = vmatpush.bf16.msra.mxu0 %v1313
    %1392 = vmatpush.bf16.msra.mxu0 %v1311
    %1393 = vmatpush.bf16.msra.mxu0 %v1309
    %1394 = vmatpush.bf16.msra.mxu0 %v1307
    %1395 = vmatpush.bf16.msra.mxu0 %v1305
    %1396 = vmatpush.bf16.msra.mxu0 %v1303
    %1397 = vmatpush.bf16.msra.mxu0 %v1301
    %1398 = vmatmul.bf16.gmra.mxu0 %v1170
    %v1399 = vpop.f32.mrf.mxu0
    %v1400 = vadd.f32 0.0, %v1399
    %v1401 = vpop.f32.mrf.mxu0
    %1402 = vdwg.mxu0
    %1403 = vmatpush.bf16.msra.mxu0 %v1331
    %1404 = vmatpush.bf16.msra.mxu0 %v1329
    %1405 = vmatpush.bf16.msra.mxu0 %v1327
    %1406 = vmatpush.bf16.msra.mxu0 %v1325
    %1407 = vmatpush.bf16.msra.mxu0 %v1323
    %1408 = vmatpush.bf16.msra.mxu0 %v1321
    %1409 = vmatpush.bf16.msra.mxu0 %v1319
    %1410 = vmatpush.bf16.msra.mxu0 %v1317
    %1411 = vmatmul.bf16.gmra.mxu0 %v1171
    %v1412 = vpop.f32.mrf.mxu0
    %v1413 = vadd.f32 %v1400, %v1412
    %v1414 = vpop.f32.mrf.mxu0
    %1415 = vdwg.mxu0
    %v1416 = vrot.slane %v1387, 4
    %v1417 = vadd.f32 %v1387, %v1416
    %v1418 = vrot.slane %v1417, 2
    %v1419 = vadd.f32 %v1417, %v1418
    %v1420 = vrot.slane %v1419, 1
    %v1421 = vadd.f32 %v1419, %v1420
    %v1422 = vrot.slane %v1413, 4
    %v1423 = vadd.f32 %v1413, %v1422
    %v1424 = vrot.slane %v1423, 2
    %v1425 = vadd.f32 %v1423, %v1424
    %v1426 = vrot.slane %v1425, 1
    %v1427 = vadd.f32 %v1425, %v1426
    %v1428 = vmul.f32 %v1421, %v1096
    %v1429 = vmul.f32 %v1427, %v1096
    %v1430 = vsub.f32 %v1387, %v1428
    %v1431 = vsub.f32 %v1413, %v1429
    %v1432 = vmul.f32 %v1430, %v1430
    %v1433 = vmul.f32 %v1431, %v1431
    %v1434 = vrot.slane %v1432, 4
    %v1435 = vadd.f32 %v1432, %v1434
    %v1436 = vrot.slane %v1435, 2
    %v1437 = vadd.f32 %v1435, %v1436
    %v1438 = vrot.slane %v1437, 1
    %v1439 = vadd.f32 %v1437, %v1438
    %v1440 = vrot.slane %v1433, 4
    %v1441 = vadd.f32 %v1433, %v1440
    %v1442 = vrot.slane %v1441, 2
    %v1443 = vadd.f32 %v1441, %v1442
    %v1444 = vrot.slane %v1443, 1
    %v1445 = vadd.f32 %v1443, %v1444
    %v1446 = vmul.f32 %v1439, %v1096
    %v1447 = vmul.f32 %v1445, %v1096
    %v1448 = vadd.f32 %v1446, 1e-05
    %v1449 = vadd.f32 %v1447, 1e-05
    %v1450 = vrsqrt.pop %v1448
    %v1451 = vmul.f32 %v1450, %v1448
    %v1452 = vmul.f32 %v1451, %v1450
    %v1453 = vmul.f32 0.5, %v1452
    %v1454 = vsub.f32 1.5, %v1453
    %v1455 = vmul.f32 %v1450, %v1454
    %vm1456 = vweird.f32 %v1448
    %vm1457 = vweird.f32 %v1450
    %vm1458 = vmor %vm1456, %vm1457
    %v1459 = vsel %vm1458, %v1450, %v1455
    %v1460 = vrsqrt.pop %v1449
    %v1461 = vmul.f32 %v1460, %v1449
    %v1462 = vmul.f32 %v1461, %v1460
    %v1463 = vmul.f32 0.5, %v1462
    %v1464 = vsub.f32 1.5, %v1463
    %v1465 = vmul.f32 %v1460, %v1464
    %vm1466 = vweird.f32 %v1449
    %vm1467 = vweird.f32 %v1460
    %vm1468 = vmor %vm1466, %vm1467
    %v1469 = vsel %vm1468, %v1460, %v1465
    %v1472 = vrot.slane %v1469, 7
    %v1473 = vsel %vm1142, %v1459, %v1472
    %v1475 = vmul.f32 %v79, %v1473
    %v1477 = vperm.slane %v1475, 0
    %v1478 = vperm.slane %v1475, 1
    %v1481 = vmul.f32 %v1387, %v1477
    %v1482 = vmul.f32 %v1413, %v1478
    %v1483 = vmul.f32 %v1428, %v1477
    %v1484 = vmul.f32 %v1429, %v1478
    %v1487 = vrot.slane %v1484, 7
    %v1488 = vsel %vm1142, %v1483, %v1487
    %v1490 = vsub.f32 %v81, %v1488
    %v1492 = vperm.slane %v1490, 0
    %v1493 = vperm.slane %v1490, 1
    %v1496 = vadd.f32 %v1481, %v1492
    %v1497 = vadd.f32 %v1482, %v1493
    %v1498 = vmax.f32 %v1496, 0.0
    %v1499 = vmax.f32 %v1497, 0.0
    %v1500 = vpack.c.bf16 %v1498, %v1498
    %v1501 = vpack.c.bf16 %v1499, %v1499
    %v1502 = vld [vmem:[#allocation7] sm:$0xff]
    %v1503 = vld [vmem:[#allocation7 + $0x8] sm:$0xff]
    %v1504 = vld [vmem:[#allocation7 + $0x10] sm:$0xff]
    %v1505 = vld [vmem:[#allocation7 + $0x18] sm:$0xff]
    %v1506 = vld [vmem:[#allocation7 + $0x20] sm:$0xff]
    %v1507 = vld [vmem:[#allocation7 + $0x28] sm:$0xff]
    %v1508 = vld [vmem:[#allocation7 + $0x30] sm:$0xff]
    %v1509 = vld [vmem:[#allocation7 + $0x38] sm:$0xff]
    %v1510 = vld [vmem:[#allocation7 + $0x40] sm:$0xff]
    %v1511 = vld [vmem:[#allocation7 + $0x48] sm:$0xff]
    %v1512 = vld [vmem:[#allocation7 + $0x50] sm:$0xff]
    %v1513 = vld [vmem:[#allocation7 + $0x58] sm:$0xff]
    %v1514 = vld [vmem:[#allocation7 + $0x60] sm:$0xff]
    %v1515 = vld [vmem:[#allocation7 + $0x68] sm:$0xff]
    %v1516 = vld [vmem:[#allocation7 + $0x70] sm:$0xff]
    %v1517 = vld [vmem:[#allocation7 + $0x78] sm:$0xff]
    %v1518 = vld [vmem:[#allocation7 + $0x80] sm:$0xff]
    %v1519 = vld [vmem:[#allocation7 + $0x88] sm:$0xff]
    %v1520 = vld [vmem:[#allocation7 + $0x90] sm:$0xff]
    %v1521 = vld [vmem:[#allocation7 + $0x98] sm:$0xff]
    %v1522 = vld [vmem:[#allocation7 + $0xa0] sm:$0xff]
    %v1523 = vld [vmem:[#allocation7 + $0xa8] sm:$0xff]
    %v1524 = vld [vmem:[#allocation7 + $0xb0] sm:$0xff]
    %v1525 = vld [vmem:[#allocation7 + $0xb8] sm:$0xff]
    %v1526 = vld [vmem:[#allocation7 + $0xc0] sm:$0xff]
    %v1527 = vld [vmem:[#allocation7 + $0xc8] sm:$0xff]
    %v1528 = vld [vmem:[#allocation7 + $0xd0] sm:$0xff]
    %v1529 = vld [vmem:[#allocation7 + $0xd8] sm:$0xff]
    %v1530 = vld [vmem:[#allocation7 + $0xe0] sm:$0xff]
    %v1531 = vld [vmem:[#allocation7 + $0xe8] sm:$0xff]
    %v1532 = vld [vmem:[#allocation7 + $0xf0] sm:$0xff]
    %v1533 = vld [vmem:[#allocation7 + $0xf8] sm:$0xff]
    %v1566 = vunpack.c.l.b16 %v1502
    %v1567 = vunpack.c.h.b16 %v1502
    %v1568 = vunpack.c.l.b16 %v1503
    %v1569 = vunpack.c.h.b16 %v1503
    %v1570 = vunpack.c.l.b16 %v1504
    %v1571 = vunpack.c.h.b16 %v1504
    %v1572 = vunpack.c.l.b16 %v1505
    %v1573 = vunpack.c.h.b16 %v1505
    %v1574 = vunpack.c.l.b16 %v1506
    %v1575 = vunpack.c.h.b16 %v1506
    %v1576 = vunpack.c.l.b16 %v1507
    %v1577 = vunpack.c.h.b16 %v1507
    %v1578 = vunpack.c.l.b16 %v1508
    %v1579 = vunpack.c.h.b16 %v1508
    %v1580 = vunpack.c.l.b16 %v1509
    %v1581 = vunpack.c.h.b16 %v1509
    %v1582 = vunpack.c.l.b16 %v1510
    %v1583 = vunpack.c.h.b16 %v1510
    %v1584 = vunpack.c.l.b16 %v1511
    %v1585 = vunpack.c.h.b16 %v1511
    %v1586 = vunpack.c.l.b16 %v1512
    %v1587 = vunpack.c.h.b16 %v1512
    %v1588 = vunpack.c.l.b16 %v1513
    %v1589 = vunpack.c.h.b16 %v1513
    %v1590 = vunpack.c.l.b16 %v1514
    %v1591 = vunpack.c.h.b16 %v1514
    %v1592 = vunpack.c.l.b16 %v1515
    %v1593 = vunpack.c.h.b16 %v1515
    %v1594 = vunpack.c.l.b16 %v1516
    %v1595 = vunpack.c.h.b16 %v1516
    %v1596 = vunpack.c.l.b16 %v1517
    %v1597 = vunpack.c.h.b16 %v1517
    %v1598 = vunpack.c.l.b16 %v1518
    %v1599 = vunpack.c.h.b16 %v1518
    %v1600 = vunpack.c.l.b16 %v1519
    %v1601 = vunpack.c.h.b16 %v1519
    %v1602 = vunpack.c.l.b16 %v1520
    %v1603 = vunpack.c.h.b16 %v1520
    %v1604 = vunpack.c.l.b16 %v1521
    %v1605 = vunpack.c.h.b16 %v1521
    %v1606 = vunpack.c.l.b16 %v1522
    %v1607 = vunpack.c.h.b16 %v1522
    %v1608 = vunpack.c.l.b16 %v1523
    %v1609 = vunpack.c.h.b16 %v1523
    %v1610 = vunpack.c.l.b16 %v1524
    %v1611 = vunpack.c.h.b16 %v1524
    %v1612 = vunpack.c.l.b16 %v1525
    %v1613 = vunpack.c.h.b16 %v1525
    %v1614 = vunpack.c.l.b16 %v1526
    %v1615 = vunpack.c.h.b16 %v1526
    %v1616 = vunpack.c.l.b16 %v1527
    %v1617 = vunpack.c.h.b16 %v1527
    %v1618 = vunpack.c.l.b16 %v1528
    %v1619 = vunpack.c.h.b16 %v1528
    %v1620 = vunpack.c.l.b16 %v1529
    %v1621 = vunpack.c.h.b16 %v1529
    %v1622 = vunpack.c.l.b16 %v1530
    %v1623 = vunpack.c.h.b16 %v1530
    %v1624 = vunpack.c.l.b16 %v1531
    %v1625 = vunpack.c.h.b16 %v1531
    %v1626 = vunpack.c.l.b16 %v1532
    %v1627 = vunpack.c.h.b16 %v1532
    %v1628 = vunpack.c.l.b16 %v1533
    %v1629 = vunpack.c.h.b16 %v1533
    %v1630 = vpack.c.b16 %v1568, %v1566
    %v1631 = vpack.c.b16 %v1569, %v1567
    %v1632 = vpack.c.b16 %v1572, %v1570
    %v1633 = vpack.c.b16 %v1573, %v1571
    %v1634 = vpack.c.b16 %v1576, %v1574
    %v1635 = vpack.c.b16 %v1577, %v1575
    %v1636 = vpack.c.b16 %v1580, %v1578
    %v1637 = vpack.c.b16 %v1581, %v1579
    %v1638 = vpack.c.b16 %v1584, %v1582
    %v1639 = vpack.c.b16 %v1585, %v1583
    %v1640 = vpack.c.b16 %v1588, %v1586
    %v1641 = vpack.c.b16 %v1589, %v1587
    %v1642 = vpack.c.b16 %v1592, %v1590
    %v1643 = vpack.c.b16 %v1593, %v1591
    %v1644 = vpack.c.b16 %v1596, %v1594
    %v1645 = vpack.c.b16 %v1597, %v1595
    %v1646 = vpack.c.b16 %v1600, %v1598
    %v1647 = vpack.c.b16 %v1601, %v1599
    %v1648 = vpack.c.b16 %v1604, %v1602
    %v1649 = vpack.c.b16 %v1605, %v1603
    %v1650 = vpack.c.b16 %v1608, %v1606
    %v1651 = vpack.c.b16 %v1609, %v1607
    %v1652 = vpack.c.b16 %v1612, %v1610
    %v1653 = vpack.c.b16 %v1613, %v1611
    %v1654 = vpack.c.b16 %v1616, %v1614
    %v1655 = vpack.c.b16 %v1617, %v1615
    %v1656 = vpack.c.b16 %v1620, %v1618
    %v1657 = vpack.c.b16 %v1621, %v1619
    %v1658 = vpack.c.b16 %v1624, %v1622
    %v1659 = vpack.c.b16 %v1625, %v1623
    %v1660 = vpack.c.b16 %v1628, %v1626
    %v1661 = vpack.c.b16 %v1629, %v1627
    %1694 = vmatpush.bf16.msra.mxu0 %v1644
    %1695 = vmatpush.bf16.msra.mxu0 %v1642
    %1696 = vmatpush.bf16.msra.mxu0 %v1640
    %1697 = vmatpush.bf16.msra.mxu0 %v1638
    %1698 = vmatpush.bf16.msra.mxu0 %v1636
    %1699 = vmatpush.bf16.msra.mxu0 %v1634
    %1700 = vmatpush.bf16.msra.mxu0 %v1632
    %1701 = vmatpush.bf16.msra.mxu0 %v1630
    %1702 = vmatmul.bf16.gmra.mxu0 %v1500
    %v1703 = vpop.f32.mrf.mxu0
    %v1704 = vadd.f32 0.0, %v1703
    %v1705 = vpop.f32.mrf.mxu0
    %1706 = vdwg.mxu0
    %1707 = vmatpush.bf16.msra.mxu0 %v1660
    %1708 = vmatpush.bf16.msra.mxu0 %v1658
    %1709 = vmatpush.bf16.msra.mxu0 %v1656
    %1710 = vmatpush.bf16.msra.mxu0 %v1654
    %1711 = vmatpush.bf16.msra.mxu0 %v1652
    %1712 = vmatpush.bf16.msra.mxu0 %v1650
    %1713 = vmatpush.bf16.msra.mxu0 %v1648
    %1714 = vmatpush.bf16.msra.mxu0 %v1646
    %1715 = vmatmul.bf16.gmra.mxu0 %v1501
    %v1716 = vpop.f32.mrf.mxu0
    %v1717 = vadd.f32 %v1704, %v1716
    %v1718 = vpop.f32.mrf.mxu0
    %1719 = vdwg.mxu0
    %1720 = vmatpush.bf16.msra.mxu0 %v1645
    %1721 = vmatpush.bf16.msra.mxu0 %v1643
    %1722 = vmatpush.bf16.msra.mxu0 %v1641
    %1723 = vmatpush.bf16.msra.mxu0 %v1639
    %1724 = vmatpush.bf16.msra.mxu0 %v1637
    %1725 = vmatpush.bf16.msra.mxu0 %v1635
    %1726 = vmatpush.bf16.msra.mxu0 %v1633
    %1727 = vmatpush.bf16.msra.mxu0 %v1631
    %1728 = vmatmul.bf16.gmra.mxu0 %v1500
    %v1729 = vpop.f32.mrf.mxu0
    %v1730 = vadd.f32 0.0, %v1729
    %v1731 = vpop.f32.mrf.mxu0
    %1732 = vdwg.mxu0
    %1733 = vmatpush.bf16.msra.mxu0 %v1661
    %1734 = vmatpush.bf16.msra.mxu0 %v1659
    %1735 = vmatpush.bf16.msra.mxu0 %v1657
    %1736 = vmatpush.bf16.msra.mxu0 %v1655
    %1737 = vmatpush.bf16.msra.mxu0 %v1653
    %1738 = vmatpush.bf16.msra.mxu0 %v1651
    %1739 = vmatpush.bf16.msra.mxu0 %v1649
    %1740 = vmatpush.bf16.msra.mxu0 %v1647
    %1741 = vmatmul.bf16.gmra.mxu0 %v1501
    %v1742 = vpop.f32.mrf.mxu0
    %v1743 = vadd.f32 %v1730, %v1742
    %v1744 = vpop.f32.mrf.mxu0
    %1745 = vdwg.mxu0
    %v1746 = vrot.slane %v1717, 4
    %v1747 = vadd.f32 %v1717, %v1746
    %v1748 = vrot.slane %v1747, 2
    %v1749 = vadd.f32 %v1747, %v1748
    %v1750 = vrot.slane %v1749, 1
    %v1751 = vadd.f32 %v1749, %v1750
    %v1752 = vrot.slane %v1743, 4
    %v1753 = vadd.f32 %v1743, %v1752
    %v1754 = vrot.slane %v1753, 2
    %v1755 = vadd.f32 %v1753, %v1754
    %v1756 = vrot.slane %v1755, 1
    %v1757 = vadd.f32 %v1755, %v1756
    %v1758 = vmul.f32 %v1751, %v1096
    %v1759 = vmul.f32 %v1757, %v1096
    %v1760 = vsub.f32 %v1717, %v1758
    %v1761 = vsub.f32 %v1743, %v1759
    %v1762 = vmul.f32 %v1760, %v1760
    %v1763 = vmul.f32 %v1761, %v1761
    %v1764 = vrot.slane %v1762, 4
    %v1765 = vadd.f32 %v1762, %v1764
    %v1766 = vrot.slane %v1765, 2
    %v1767 = vadd.f32 %v1765, %v1766
    %v1768 = vrot.slane %v1767, 1
    %v1769 = vadd.f32 %v1767, %v1768
    %v1770 = vrot.slane %v1763, 4
    %v1771 = vadd.f32 %v1763, %v1770
    %v1772 = vrot.slane %v1771, 2
    %v1773 = vadd.f32 %v1771, %v1772
    %v1774 = vrot.slane %v1773, 1
    %v1775 = vadd.f32 %v1773, %v1774
    %v1776 = vmul.f32 %v1769, %v1096
    %v1777 = vmul.f32 %v1775, %v1096
    %v1778 = vadd.f32 %v1776, 1e-05
    %v1779 = vadd.f32 %v1777, 1e-05
    %v1780 = vrsqrt.pop %v1778
    %v1781 = vmul.f32 %v1780, %v1778
    %v1782 = vmul.f32 %v1781, %v1780
    %v1783 = vmul.f32 0.5, %v1782
    %v1784 = vsub.f32 1.5, %v1783
    %v1785 = vmul.f32 %v1780, %v1784
    %vm1786 = vweird.f32 %v1778
    %vm1787 = vweird.f32 %v1780
    %vm1788 = vmor %vm1786, %vm1787
    %v1789 = vsel %vm1788, %v1780, %v1785
    %v1790 = vrsqrt.pop %v1779
    %v1791 = vmul.f32 %v1790, %v1779
    %v1792 = vmul.f32 %v1791, %v1790
    %v1793 = vmul.f32 0.5, %v1792
    %v1794 = vsub.f32 1.5, %v1793
    %v1795 = vmul.f32 %v1790, %v1794
    %vm1796 = vweird.f32 %v1779
    %vm1797 = vweird.f32 %v1790
    %vm1798 = vmor %vm1796, %vm1797
    %v1799 = vsel %vm1798, %v1790, %v1795
    %v1802 = vrot.slane %v1799, 7
    %v1803 = vsel %vm1142, %v1789, %v1802
    %v1805 = vmul.f32 %v83, %v1803
    %v1807 = vperm.slane %v1805, 0
    %v1808 = vperm.slane %v1805, 1
    %v1811 = vmul.f32 %v1717, %v1807
    %v1812 = vmul.f32 %v1743, %v1808
    %v1813 = vmul.f32 %v1758, %v1807
    %v1814 = vmul.f32 %v1759, %v1808
    %v1817 = vrot.slane %v1814, 7
    %v1818 = vsel %vm1142, %v1813, %v1817
    %v1820 = vsub.f32 %v85, %v1818
    %v1822 = vperm.slane %v1820, 0
    %v1823 = vperm.slane %v1820, 1
    %v1826 = vadd.f32 %v1811, %v1822
    %v1827 = vadd.f32 %v1812, %v1823
    %v1828 = vld [vmem:[%s1 + $0x6] ss:$0 sm:$0xff]
    %v1829 = vld [vmem:[%s1 + $0x7] ss:$0 sm:$0xff]
    %s1830 = scalar_lea.vmem %s1, 16
    %v1831 = vld [vmem:[%s1830] ss:$8 sm:$0x3]
    %v1832 = vpack.c.bf16 %v1826, %v1826
    %v1833 = vpack.c.bf16 %v1827, %v1827
    %v1834 = vld [vmem:[%s5] sm:$0xf]
    %v1835 = vld [vmem:[%s5 + $0x4] sm:$0xf]
    %v1836 = vld [vmem:[%s5 + $0x8] sm:$0xf]
    %v1837 = vld [vmem:[%s5 + $0xc] sm:$0xf]
    %v1838 = vld [vmem:[%s5 + $0x10] sm:$0xf]
    %v1839 = vld [vmem:[%s5 + $0x14] sm:$0xf]
    %v1840 = vld [vmem:[%s5 + $0x18] sm:$0xf]
    %v1841 = vld [vmem:[%s5 + $0x1c] sm:$0xf]
    %v1842 = vld [vmem:[%s5 + $0x20] sm:$0xf]
    %v1843 = vld [vmem:[%s5 + $0x24] sm:$0xf]
    %v1844 = vld [vmem:[%s5 + $0x28] sm:$0xf]
    %v1845 = vld [vmem:[%s5 + $0x2c] sm:$0xf]
    %v1846 = vld [vmem:[%s5 + $0x30] sm:$0xf]
    %v1847 = vld [vmem:[%s5 + $0x34] sm:$0xf]
    %v1848 = vld [vmem:[%s5 + $0x38] sm:$0xf]
    %v1849 = vld [vmem:[%s5 + $0x3c] sm:$0xf]
    %v1850 = vld [vmem:[%s5 + $0x40] sm:$0xf]
    %v1851 = vld [vmem:[%s5 + $0x44] sm:$0xf]
    %v1852 = vld [vmem:[%s5 + $0x48] sm:$0xf]
    %v1853 = vld [vmem:[%s5 + $0x4c] sm:$0xf]
    %v1854 = vld [vmem:[%s5 + $0x50] sm:$0xf]
    %v1855 = vld [vmem:[%s5 + $0x54] sm:$0xf]
    %v1856 = vld [vmem:[%s5 + $0x58] sm:$0xf]
    %v1857 = vld [vmem:[%s5 + $0x5c] sm:$0xf]
    %v1858 = vld [vmem:[%s5 + $0x60] sm:$0xf]
    %v1859 = vld [vmem:[%s5 + $0x64] sm:$0xf]
    %v1860 = vld [vmem:[%s5 + $0x68] sm:$0xf]
    %v1861 = vld [vmem:[%s5 + $0x6c] sm:$0xf]
    %v1862 = vld [vmem:[%s5 + $0x70] sm:$0xf]
    %v1863 = vld [vmem:[%s5 + $0x74] sm:$0xf]
    %v1864 = vld [vmem:[%s5 + $0x78] sm:$0xf]
    %v1865 = vld [vmem:[%s5 + $0x7c] sm:$0xf]
    %v1898 = vunpack.c.l.b16 %v1834
    %v1899 = vunpack.c.l.b16 %v1835
    %v1900 = vunpack.c.l.b16 %v1836
    %v1901 = vunpack.c.l.b16 %v1837
    %v1902 = vunpack.c.l.b16 %v1838
    %v1903 = vunpack.c.l.b16 %v1839
    %v1904 = vunpack.c.l.b16 %v1840
    %v1905 = vunpack.c.l.b16 %v1841
    %v1906 = vunpack.c.l.b16 %v1842
    %v1907 = vunpack.c.l.b16 %v1843
    %v1908 = vunpack.c.l.b16 %v1844
    %v1909 = vunpack.c.l.b16 %v1845
    %v1910 = vunpack.c.l.b16 %v1846
    %v1911 = vunpack.c.l.b16 %v1847
    %v1912 = vunpack.c.l.b16 %v1848
    %v1913 = vunpack.c.l.b16 %v1849
    %v1914 = vunpack.c.l.b16 %v1850
    %v1915 = vunpack.c.l.b16 %v1851
    %v1916 = vunpack.c.l.b16 %v1852
    %v1917 = vunpack.c.l.b16 %v1853
    %v1918 = vunpack.c.l.b16 %v1854
    %v1919 = vunpack.c.l.b16 %v1855
    %v1920 = vunpack.c.l.b16 %v1856
    %v1921 = vunpack.c.l.b16 %v1857
    %v1922 = vunpack.c.l.b16 %v1858
    %v1923 = vunpack.c.l.b16 %v1859
    %v1924 = vunpack.c.l.b16 %v1860
    %v1925 = vunpack.c.l.b16 %v1861
    %v1926 = vunpack.c.l.b16 %v1862
    %v1927 = vunpack.c.l.b16 %v1863
    %v1928 = vunpack.c.l.b16 %v1864
    %v1929 = vunpack.c.l.b16 %v1865
    %v1930 = vpack.c.b16 %v1899, %v1898
    %v1931 = vpack.c.b16 %v1901, %v1900
    %v1932 = vpack.c.b16 %v1903, %v1902
    %v1933 = vpack.c.b16 %v1905, %v1904
    %v1934 = vpack.c.b16 %v1907, %v1906
    %v1935 = vpack.c.b16 %v1909, %v1908
    %v1936 = vpack.c.b16 %v1911, %v1910
    %v1937 = vpack.c.b16 %v1913, %v1912
    %v1938 = vpack.c.b16 %v1915, %v1914
    %v1939 = vpack.c.b16 %v1917, %v1916
    %v1940 = vpack.c.b16 %v1919, %v1918
    %v1941 = vpack.c.b16 %v1921, %v1920
    %v1942 = vpack.c.b16 %v1923, %v1922
    %v1943 = vpack.c.b16 %v1925, %v1924
    %v1944 = vpack.c.b16 %v1927, %v1926
    %v1945 = vpack.c.b16 %v1929, %v1928
    %1962 = vmatpush.bf16.msra.mxu0 %v1937
    %1963 = vmatpush.bf16.msra.mxu0 %v1936
    %1964 = vmatpush.bf16.msra.mxu0 %v1935
    %1965 = vmatpush.bf16.msra.mxu0 %v1934
    %1966 = vmatpush.bf16.msra.mxu0 %v1933
    %1967 = vmatpush.bf16.msra.mxu0 %v1932
    %1968 = vmatpush.bf16.msra.mxu0 %v1931
    %1969 = vmatpush.bf16.msra.mxu0 %v1930
    %1970 = vmatmul.bf16.gmra.mxu0 %v1832
    %v1971 = vpop.f32.mrf.mxu0
    %v1972 = vadd.f32 0.0, %v1971
    %v1973 = vpop.f32.mrf.mxu0
    %1974 = vdwg.mxu0
    %1975 = vmatpush.bf16.msra.mxu0 %v1945
    %1976 = vmatpush.bf16.msra.mxu0 %v1944
    %1977 = vmatpush.bf16.msra.mxu0 %v1943
    %1978 = vmatpush.bf16.msra.mxu0 %v1942
    %1979 = vmatpush.bf16.msra.mxu0 %v1941
    %1980 = vmatpush.bf16.msra.mxu0 %v1940
    %1981 = vmatpush.bf16.msra.mxu0 %v1939
    %1982 = vmatpush.bf16.msra.mxu0 %v1938
    %1983 = vmatmul.bf16.gmra.mxu0 %v1833
    %v1984 = vpop.f32.mrf.mxu0
    %v1985 = vadd.f32 %v1972, %v1984
    %v1986 = vpop.f32.mrf.mxu0
    %1987 = vdwg.mxu0
    %vm1988 = vcmask 523264
    %v1989 = vsel %vm1988, %v1985, 0.0
    %v1990 = vrot.slane %v1989, 4
    %v1991 = vadd.f32 %v1989, %v1990
    %v1992 = vrot.slane %v1991, 2
    %v1993 = vadd.f32 %v1991, %v1992
    %v1994 = vrot.slane %v1993, 1
    %v1995 = vadd.f32 %v1993, %v1994
    %v1996 = vmul.f32 %v1995, %v1096
    %v1997 = vsub.f32 %v1985, %v1996
    %v1998 = vmul.f32 %v1997, %v1997
    %v1999 = vsel %vm1988, %v1998, 0.0
    %v2000 = vrot.slane %v1999, 4
    %v2001 = vadd.f32 %v1999, %v2000
    %v2002 = vrot.slane %v2001, 2
    %v2003 = vadd.f32 %v2001, %v2002
    %v2004 = vrot.slane %v2003, 1
    %v2005 = vadd.f32 %v2003, %v2004
    %v2006 = vmul.f32 %v2005, %v1096
    %v2007 = vadd.f32 %v2006, 1e-05
    %v2008 = vrsqrt.pop %v2007
    %v2009 = vmul.f32 %v2008, %v2007
    %v2010 = vmul.f32 %v2009, %v2008
    %v2011 = vmul.f32 0.5, %v2010
    %v2012 = vsub.f32 1.5, %v2011
    %v2013 = vmul.f32 %v2008, %v2012
    %vm2014 = vweird.f32 %v2007
    %vm2015 = vweird.f32 %v2008
    %vm2016 = vmor %vm2014, %vm2015
    %v2017 = vsel %vm2016, %v2008, %v2013
    %v2018 = vmul.f32 %v1828, %v2017
    %v2019 = vmul.f32 %v1985, %v2018
    %v2020 = vmul.f32 %v1996, %v2018
    %v2021 = vsub.f32 %v1829, %v2020
    %v2022 = vadd.f32 %v2019, %v2021
    %v2023 = vmax.f32 %v2022, 0.0
    %v2024 = vpack.c.bf16 %v2023, %v2023
    %v2025 = vld [vmem:[%s6] sm:$0xff]
    %v2026 = vld [vmem:[%s6 + $0x8] sm:$0xff]
    %v2027 = vld [vmem:[%s6 + $0x10] sm:$0xff]
    %v2028 = vld [vmem:[%s6 + $0x18] sm:$0xff]
    %v2029 = vld [vmem:[%s6 + $0x20] sm:$0xff]
    %v2030 = vld [vmem:[%s6 + $0x28] sm:$0xff]
    %v2031 = vld [vmem:[%s6 + $0x30] sm:$0xff]
    %v2032 = vld [vmem:[%s6 + $0x38] sm:$0xff]
    %v2034 = vperm.slane %v1831, 0
    %v2035 = vperm.slane %v1831, 1
    %v2046 = vunpack.c.l.b16 %v2025
    %v2047 = vunpack.c.h.b16 %v2025
    %v2048 = vunpack.c.l.b16 %v2026
    %v2049 = vunpack.c.h.b16 %v2026
    %v2050 = vunpack.c.l.b16 %v2027
    %v2051 = vunpack.c.h.b16 %v2027
    %v2052 = vunpack.c.l.b16 %v2028
    %v2053 = vunpack.c.h.b16 %v2028
    %v2054 = vunpack.c.l.b16 %v2029
    %v2055 = vunpack.c.h.b16 %v2029
    %v2056 = vunpack.c.l.b16 %v2030
    %v2057 = vunpack.c.h.b16 %v2030
    %v2058 = vunpack.c.l.b16 %v2031
    %v2059 = vunpack.c.h.b16 %v2031
    %v2060 = vunpack.c.l.b16 %v2032
    %v2061 = vunpack.c.h.b16 %v2032
    %v2062 = vpack.c.b16 %v2048, %v2046
    %v2063 = vpack.c.b16 %v2049, %v2047
    %v2064 = vpack.c.b16 %v2052, %v2050
    %v2065 = vpack.c.b16 %v2053, %v2051
    %v2066 = vpack.c.b16 %v2056, %v2054
    %v2067 = vpack.c.b16 %v2057, %v2055
    %v2068 = vpack.c.b16 %v2060, %v2058
    %v2069 = vpack.c.b16 %v2061, %v2059
    %v2079 = vsel %vm1988, %v2024, 0
    %2081 = vmatpush.bf16.msra.mxu0 0
    %2082 = vmatpush.bf16.msra.mxu0 0
    %2083 = vmatpush.bf16.msra.mxu0 0
    %2084 = vmatpush.bf16.msra.mxu0 0
    %2085 = vmatpush.bf16.msra.mxu0 %v2068
    %2086 = vmatpush.bf16.msra.mxu0 %v2066
    %2087 = vmatpush.bf16.msra.mxu0 %v2064
    %2088 = vmatpush.bf16.msra.mxu0 %v2062
    %2089 = vmatmul.bf16.gmra.mxu0 %v2079
    %v2090 = vpop.f32.mrf.mxu0
    %v2091 = vadd.f32 %v2034, %v2090
    %v2092 = vpop.f32.mrf.mxu0
    %2093 = vdwg.mxu0
    %2094 = vmatpush.bf16.msra.mxu0 0
    %2095 = vmatpush.bf16.msra.mxu0 0
    %2096 = vmatpush.bf16.msra.mxu0 0
    %2097 = vmatpush.bf16.msra.mxu0 0
    %2098 = vmatpush.bf16.msra.mxu0 %v2069
    %2099 = vmatpush.bf16.msra.mxu0 %v2067
    %2100 = vmatpush.bf16.msra.mxu0 %v2065
    %2101 = vmatpush.bf16.msra.mxu0 %v2063
    %2102 = vmatmul.bf16.gmra.mxu0 %v2079
    %v2103 = vpop.f32.mrf.mxu0
    %v2104 = vadd.f32 %v2035, %v2103
    %v2105 = vpop.f32.mrf.mxu0
    %2106 = vdwg.mxu0
    %2107 = vst [vmem:[#allocation8] sm:$0xff] %v2091
    %2108 = vst [vmem:[#allocation8 + $0x8] sm:$0xff] %v2104
    // Predicated region
    $region42: #{tpu_custom_call.1} parent=1 // pred_check
      _
    $region43: #{tpu_custom_call.1} parent=1 // pred_check_branch
      %2110 = sbr.rel (0) target = $region45
    $region44: #{tpu_custom_call.1} parent=1 // pred_region
      %2112 = vsyncadd [#allocation4], 0
      %s2114 = sshll.u32 [#allocation8], 4
      %s2115 = int_to_ptr.vmem [resolvable:$true] %s2114
      %s2116 = sshll.u32 %s7, 4
      %s2117 = int_to_ptr.hbm [resolvable:$true] %s2116
      %2119 = dma.vmem_to_hbm [thread:$0]  %s2115, 256, %s2117, [#allocation4]
    $region45: #{tpu_custom_call.1} parent=1 // pred_fallthru
      _
    // Predicated region
    $region46: #{tpu_custom_call.1} parent=1 // pred_check
      _
    $region47: #{tpu_custom_call.1} parent=1 // pred_check_branch
      %2121 = sbr.rel (0) target = $region49
    $region48: #{tpu_custom_call.1} parent=1 // pred_region
      %2123 = dma.done [#allocation4], 256
    $region49: #{tpu_custom_call.1} parent=1 // pred_fallthru
      _
    %2124 = vsyncpa [#allocation3], 1
    %2125 = vsyncpa [#allocation6], 1
    %2126 = vsyncpa [#allocation4], 1

</llo_original>
